<compile_context>
chip_gen: v7x
topology: tpu7x:2x2x1
jax: 0.10.0
libtpu: 0.0.40
codegen_flags: <defaults>
</compile_context>

<pallas_src>
import math

import numpy as np
import jax
import jax.numpy as jnp
from jax.experimental import pallas as pl
from jax.experimental.pallas import tpu as pltpu


def _round_up(n, m):
    return ((n + m - 1) // m) * m


def _sine_pe_kernel(xe_ref, expand_ref, phase_ref, o_ref):
    """One row-tile of the sinusoidal embedding.

    xe_ref    : (KP, TR)  transposed folded positions (sublane-padded with 0s).
    expand_ref: (KP, KD)  scaled one-hot: expand[g, c] = 1/dim_t[c % D] if
                          c // D == g else 0. Resident in VMEM.
    phase_ref : (1,  KD)  0 for even channels, pi/2 for odd (turns sin -> cos).
    o_ref     : (TR, KD)  lane-dense output tile (KD is a multiple of 128).
    """
    # Lane expansion + 1/dim_t scaling on the idle MXU (vector-extended slot).
    x_scaled = jax.lax.dot_general(
        xe_ref[...], expand_ref[...],
        dimension_numbers=(((0,), (0,)), ((), ())),     # contract the KP axis
        precision=jax.lax.Precision.HIGHEST,
        preferred_element_type=jnp.float32)
    # One transcendental per element: cos(t) = sin(t + pi/2).
    o_ref[...] = jnp.sin(x_scaled + phase_ref[...]).astype(o_ref.dtype)


def position_embedding_sine(x, mask, *, num_pos_feats=64, temperature=10000,
                            normalize=False, scale=None, out_dtype=jnp.float32,
                            tile_out_bytes=2 * 1024 * 1024):
    """Pallas TPU implementation of PositionEmbeddingSine.forward(x, mask).

    x    : (B, L, d_model) -- unused by the math (PyTorch only uses its device).
    mask : (B, L) with 1.0 as valid.
    Returns (B, L, num_pos_feats) in `out_dtype` (float32 by default).
    """
    if scale is not None and normalize is False:
        raise ValueError("normalize should be True if scale is passed")
    if scale is None:
        scale = 2 * math.pi
    del x  # only used for device placement in the PyTorch module

    B, L = mask.shape
    D = int(num_pos_feats)

    # ---- tiny (B, L) prolog in XLA: cumulative positions (+ normalization) ----
    x_embed = jnp.cumsum(mask.astype(jnp.float32), axis=1)            # (B, L)
    if normalize:
        eps = 1e-6
        x_embed = x_embed / (x_embed[:, -1:] + eps) * scale

    # ---- lane folding / channel padding: make the output last dim % 128 == 0 --
    if D % 128 == 0:
        k, d_pad = 1, D
    else:
        k = math.lcm(D, 128) // D
        if k * D * 4 * 128 <= tile_out_bytes:      # a 128-row tile still fits
            d_pad = D
        else:                                      # pathological D: pad channels
            k, d_pad = 1, _round_up(D, 128)
    KD = k * d_pad                                  # always a multiple of 128
    KP = _round_up(k, 8)                            # fold axis -> MXU contracting dim

    BL = B * L
    BLr = -(-BL // k)                               # ceil(BL / k)
    BL_pad = BLr * k

    # transposed folded positions: xe_t[g, r] = x_embed.flat[r*k + g]
    x_flat = x_embed.reshape(-1)
    if BL_pad != BL:
        x_flat = jnp.pad(x_flat, (0, BL_pad - BL))
    xe_t = x_flat.reshape(BLr, k).T                                   # (k, BLr)
    if KP > k:
        xe_t = jnp.pad(xe_t, ((0, KP - k), (0, 0)))                   # (KP, BLr)

    # ---- resident constants: scaled one-hot expansion matrix + phase ----------
    ch = jnp.arange(KD)
    d_idx = ch % d_pad                                                # channel within group
    g_idx = ch // d_pad                                               # folded group id
    i = jnp.arange(d_pad, dtype=jnp.float32)
    dim_t = jnp.asarray(temperature, jnp.float32) ** (2.0 * jnp.floor(i / 2.0) / D)
    inv_d = jnp.where(jnp.arange(d_pad) < D, 1.0 / dim_t, 0.0)        # 0 in channel pad
    phase_d = jnp.where((jnp.arange(d_pad) % 2 == 1) & (jnp.arange(d_pad) < D),
                        jnp.float32(math.pi / 2.0), jnp.float32(0.0))
    expand = ((jnp.arange(KP)[:, None] == g_idx[None, :]).astype(jnp.float32)
              * inv_d[d_idx][None, :])                                # (KP, KD)
    phase = phase_d[d_idx].reshape(1, KD)                             # (1, KD)

    # ---- row tile: ~tile_out_bytes of output per grid step --------------------
    out_itemsize = np.dtype(out_dtype).itemsize
    out_row_bytes = KD * out_itemsize
    tr = max(128, (tile_out_bytes // out_row_bytes) // 128 * 128)
    # prefer >= 4 grid steps (2 TensorCores on v7x) when tiles stay >= 1/4 target
    quarter = (BLr // 4) // 128 * 128
    if quarter >= 128 and quarter * out_row_bytes >= tile_out_bytes // 4:
        tr = min(tr, quarter)
    if tr >= BLr:
        tr = BLr                                    # single block == full array dims
    grid_rows = pl.cdiv(BLr, tr)                    # ragged last tile is masked by Pallas

    out = pl.pallas_call(
        _sine_pe_kernel,
        out_shape=jax.ShapeDtypeStruct((BLr, KD), out_dtype),
        grid=(grid_rows,),
        in_specs=[
            pl.BlockSpec((KP, tr), lambda r: (0, r)),    # transposed folded positions
            pl.BlockSpec((KP, KD), lambda r: (0, 0)),    # scaled one-hot (resident)
            pl.BlockSpec((1, KD), lambda r: (0, 0)),     # phase          (resident)
        ],
        out_specs=pl.BlockSpec((tr, KD), lambda r: (r, 0)),
        compiler_params=pltpu.CompilerParams(
            dimension_semantics=("parallel",),
            vmem_limit_bytes=32 * 1024 * 1024),
        cost_estimate=pl.CostEstimate(
            flops=2 * BLr * KP * KD + BLr * KD,
            transcendentals=BLr * KD,
            bytes_accessed=(BLr * KD * out_itemsize
                            + 4 * (KP * BLr + KP * KD + KD))),
    )(xe_t, expand, phase)

    out = out.reshape(BL_pad, d_pad)
    if BL_pad != BL or d_pad != D:
        out = out[:BL, :D]
    return out.reshape(B, L, D)


def reference(mask, num_pos_feats=64, temperature=10000, normalize=False, scale=None):
    """Pure-JAX mirror of the PyTorch forward (for verification)."""
    if scale is None:
        scale = 2 * math.pi
    x_embed = jnp.cumsum(mask.astype(jnp.float32), axis=1)
    if normalize:
        eps = 1e-6
        x_embed = x_embed / (x_embed[:, -1:] + eps) * scale
    dim_t = jnp.arange(num_pos_feats, dtype=jnp.float32)
    dim_t = temperature ** (2.0 * jnp.floor(dim_t / 2.0) / num_pos_feats)
    pos = x_embed[:, :, None] / dim_t
    pos = jnp.stack([jnp.sin(pos[:, :, 0::2]), jnp.cos(pos[:, :, 1::2])],
                    axis=3).reshape(mask.shape[0], mask.shape[1], -1)
    return pos


if __name__ == "__main__":
    key = jax.random.PRNGKey(0)
    B, L, d_model = 2, 64, 32
    D = 64                       # module default num_pos_feats

    k_mask, k_x = jax.random.split(key)
    mask = jax.random.bernoulli(k_mask, p=0.7, shape=(B, L)).astype(jnp.float32)
    x = jax.random.normal(k_x, (B, L, d_model), dtype=jnp.float32)  # unused by the math

    # 1) module defaults (normalize=False)
    out = jax.block_until_ready(position_embedding_sine(x, mask, num_pos_feats=D))
    ref = reference(mask, D)
    assert out.shape == (B, L, D)
    assert jnp.allclose(out, ref, atol=2e-4, rtol=1e-4), "mismatch (normalize=False)"

    # 2) normalize=True path (as used by FlashVTG's build_position_encoding)
    out_n = jax.block_until_ready(
        position_embedding_sine(x, mask, num_pos_feats=D, normalize=True))
    ref_n = reference(mask, D, normalize=True)
    assert jnp.allclose(out_n, ref_n, atol=5e-5, rtol=1e-5), "mismatch (normalize=True)"

    # 3) D a multiple of 128 (no lane folding, k == 1)
    out_128 = jax.block_until_ready(
        position_embedding_sine(x, mask, num_pos_feats=128, normalize=True))
    ref_128 = reference(mask, 128, normalize=True)
    assert jnp.allclose(out_128, ref_128, atol=5e-5, rtol=1e-5), "mismatch (D=128)"

    # 4) multi-step grid with a ragged last tile (small tile override keeps shapes small)
    B2, L2 = 2, 636
    mask2 = jax.random.bernoulli(k_mask, p=0.9, shape=(B2, L2)).astype(jnp.float32)
    x2 = jnp.zeros((B2, L2, d_model), jnp.float32)
    out2 = jax.block_until_ready(
        position_embedding_sine(x2, mask2, num_pos_feats=D, normalize=True,
                                tile_out_bytes=64 * 1024))
    ref2 = reference(mask2, D, normalize=True)
    assert out2.shape == (B2, L2, D)
    assert jnp.allclose(out2, ref2, atol=5e-5, rtol=1e-5), "mismatch (ragged grid)"

    print("KERNEL_OK")
</pallas_src>

<mosaic_0001>
module attributes {stable_mosaic.version = 11 : i64} {
  func.func @_sine_pe_kernel(%arg0: i32, %arg1: memref<8x64xf32, #tpu.memory_space<vmem>>, %arg2: memref<8x128xf32, #tpu.memory_space<vmem>>, %arg3: memref<1x128xf32, #tpu.memory_space<vmem>>, %arg4: memref<64x128xf32, #tpu.memory_space<vmem>>) attributes {dimension_semantics = [#tpu.dimension_semantics<parallel>], iteration_bounds = array<i64: 1>, scalar_prefetch = 0 : i64, scratch_operands = 0 : i64, tpu.core_type = #tpu.core_type<tc>, window_params = [{transform_indices = @transform_0, window_bounds = array<i64: 8, 64>}, {pipeline_mode = #tpu.pipeline_mode<synchronous>, transform_indices = @transform_1, window_bounds = array<i64: 8, 128>}, {pipeline_mode = #tpu.pipeline_mode<synchronous>, transform_indices = @transform_2, window_bounds = array<i64: 1, 128>}, {transform_indices = @transform_3, window_bounds = array<i64: 64, 128>}]} {
    %c0 = arith.constant 0 : index
    %c0_0 = arith.constant 0 : index
    %0 = vector.load %arg1[%c0, %c0_0] : memref<8x64xf32, #tpu.memory_space<vmem>>, vector<8x64xf32>
    %c0_1 = arith.constant 0 : index
    %c0_2 = arith.constant 0 : index
    %1 = vector.load %arg2[%c0_1, %c0_2] : memref<8x128xf32, #tpu.memory_space<vmem>>, vector<8x128xf32>
    %cst = arith.constant dense<0.000000e+00> : vector<64x128xf32>
    %2 = tpu.matmul %0, %1, %cst {dimension_numbers = #tpu.dot_dimension_numbers<[0], [0], [1], [1], [0, 1, 1, 1], [], []>, precision = #tpu.contract_precision<fp32>} : vector<8x64xf32>, vector<8x128xf32>, vector<64x128xf32> -> vector<64x128xf32>
    %c0_3 = arith.constant 0 : index
    %c0_4 = arith.constant 0 : index
    %3 = vector.load %arg3[%c0_3, %c0_4] : memref<1x128xf32, #tpu.memory_space<vmem>>, vector<1x128xf32>
    %4 = vector.broadcast %3 : vector<1x128xf32> to vector<64x128xf32>
    %5 = arith.addf %2, %4 : vector<64x128xf32>
    %6 = math.sin %5 : vector<64x128xf32>
    %c0_5 = arith.constant 0 : index
    %c0_6 = arith.constant 0 : index
    %7 = vector.load %arg4[%c0_5, %c0_6] : memref<64x128xf32, #tpu.memory_space<vmem>>, vector<64x128xf32>
    tpu.vector_store %arg4[%c0_5, %c0_6], %6 {strides = array<i32>} : memref<64x128xf32, #tpu.memory_space<vmem>>, vector<64x128xf32>,
    return
  }
  func.func @transform_0(%arg0: i32) -> (i32, i32) {
    %c0_i32 = arith.constant 0 : i32
    %c0_i32_0 = arith.constant 0 : i32
    return %c0_i32, %arg0 : i32, i32
  }
  func.func @transform_1(%arg0: i32) -> (i32, i32) {
    %c0_i32 = arith.constant 0 : i32
    %c0_i32_0 = arith.constant 0 : i32
    %c0_i32_1 = arith.constant 0 : i32
    return %c0_i32, %c0_i32_0 : i32, i32
  }
  func.func @transform_2(%arg0: i32) -> (i32, i32) {
    %c0_i32 = arith.constant 0 : i32
    %c0_i32_0 = arith.constant 0 : i32
    %c0_i32_1 = arith.constant 0 : i32
    return %c0_i32, %c0_i32_0 : i32, i32
  }
  func.func @transform_3(%arg0: i32) -> (i32, i32) {
    %c0_i32 = arith.constant 0 : i32
    %c0_i32_0 = arith.constant 0 : i32
    return %arg0, %c0_i32 : i32, i32
  }
}

</mosaic_0001>

<llo_original>
// kernel: tpu_custom_call.1
$region0: #{tpu_custom_call.1}
  #allocation0 [shape = 'u32[]', space=smem, size = 0x4, offset = 0x4, fixed_abs, tag = 'smem constant byte address 0x4 - core index']
  #allocation1 [shape = 'u32[144,128]{1,0:T(1,128)}', space=vmem, size = 0x12000, scoped, tag = 'internal scratch']
  %s0 = inlined_call_operand.hbm [shape: f32[8,64], index: 0, kind: input, shape index: {}]
  %s1 = inlined_call_operand.hbm [shape: f32[8,128], index: 1, kind: input, shape index: {}]
  %s2 = inlined_call_operand.vmem [shape: f32[1,128], index: 2, kind: input, shape index: {}]
  %s3 = inlined_call_operand.hbm [shape: f32[64,128], index: 3, kind: output, shape index: {}]
  %s4 = sld [smem:[#allocation0]]
  $region30: #{tpu_custom_call.1} parent=0
    _
  %s6 = ssub.s32 1, %s4
  %s7 = scalar_select 0, %s6, %s4
  $region1: #{tpu_custom_call.1} parent=0
    #allocation2 [shape = 'u8[4096]{0}', space=vmem, size = 0x1000, scoped, tag = 'input window, operand 0, single buffered']
    #allocation3 [shape = 's32[1]{0}', space=sflag, size = 0x4, scoped, tag = 'scoped memory for tpu_custom_call.1']
    #allocation4 [shape = 's32[1]{0}', space=sflag, size = 0x4, scoped, tag = 'scoped memory for tpu_custom_call.1']
    #allocation5 [shape = 'u8[4096]{0}', space=vmem, size = 0x1000, scoped, tag = 'input window, operand 1, single buffered']
    #allocation6 [shape = 's32[1]{0}', space=sflag, size = 0x4, scoped, tag = 'scoped memory for tpu_custom_call.1']
    #allocation7 [shape = 'u8[32768]{0}', space=vmem, size = 0x8000, scoped, tag = 'output window, operand 0, single buffered']
    %8 = vsyncpa [#allocation3], 0
    %9 = vsyncpa [#allocation6], 0
    %10 = vsyncpa [#allocation4], 0
    // Predicated region
    $region2: #{tpu_custom_call.1} parent=1 // pred_check
      _
    $region3: #{tpu_custom_call.1} parent=1 // pred_check_branch
      %12 = sbr.rel (0) target = $region5
    $region4: #{tpu_custom_call.1} parent=1 // pred_region
      %s14 = ssub.s32 128, 128
      %15 = vsyncadd [#allocation3], %s14
      %s17 = sshll.u32 [#allocation2], 4
      %s18 = int_to_ptr.vmem [resolvable:$true] %s17
      %20 = dma.hbm_to_vmem [thread:$0]  %s0, 128, %s18, [#allocation3]
    $region5: #{tpu_custom_call.1} parent=1 // pred_fallthru
      _
    // Predicated region
    $region6: #{tpu_custom_call.1} parent=1 // pred_check
      _
    $region7: #{tpu_custom_call.1} parent=1 // pred_check_branch
      %22 = sbr.rel (0) target = $region9
    $region8: #{tpu_custom_call.1} parent=1 // pred_region
      %s24 = ssub.s32 128, 128
      %25 = vsyncadd [#allocation6], %s24
      %s27 = sshll.u32 [#allocation5], 4
      %s28 = int_to_ptr.vmem [resolvable:$true] %s27
      %30 = dma.hbm_to_vmem [thread:$0]  %s1, 128, %s28, [#allocation6]
    $region9: #{tpu_custom_call.1} parent=1 // pred_fallthru
      _
    // Predicated region
    $region10: #{tpu_custom_call.1} parent=1 // pred_check
      _
    $region11: #{tpu_custom_call.1} parent=1 // pred_check_branch
      %32 = sbr.rel (0) target = $region13
    $region12: #{tpu_custom_call.1} parent=1 // pred_region
      _
    $region13: #{tpu_custom_call.1} parent=1 // pred_fallthru
      _
    // Predicated region
    $region14: #{tpu_custom_call.1} parent=1 // pred_check
      _
    $region15: #{tpu_custom_call.1} parent=1 // pred_check_branch
      %34 = sbr.rel (0) target = $region17
    $region16: #{tpu_custom_call.1} parent=1 // pred_region
      %35 = dma.done [#allocation3], 128
    $region17: #{tpu_custom_call.1} parent=1 // pred_fallthru
      _
    // Predicated region
    $region18: #{tpu_custom_call.1} parent=1 // pred_check
      _
    $region19: #{tpu_custom_call.1} parent=1 // pred_check_branch
      %37 = sbr.rel (0) target = $region21
    $region20: #{tpu_custom_call.1} parent=1 // pred_region
      %38 = dma.done [#allocation6], 128
    $region21: #{tpu_custom_call.1} parent=1 // pred_fallthru
      _
    %v39 = vld [vmem:[#allocation2] sm:$0xff]
    %v40 = vld [vmem:[#allocation5] sm:$0xff]
    %v41 = vld [vmem:[%s2] sm:$0x1]
    %v43 = vlaneseq
    %v44 = vshrl.u32 %v43, 7
    %v45 = vsub.s32 0, %v44
    %v46 = vrot.slane %v41, %v45
    %48 = vxpose.xlu0.b32.start [1/16] %v39, 128
    %49 = vxpose.xlu0.b32.cont [2/16] 0.0, 128
    %50 = vxpose.xlu0.b32.cont [3/16] 0.0, 128
    %51 = vxpose.xlu0.b32.cont [4/16] 0.0, 128
    %52 = vxpose.xlu0.b32.cont [5/16] 0.0, 128
    %53 = vxpose.xlu0.b32.cont [6/16] 0.0, 128
    %54 = vxpose.xlu0.b32.cont [7/16] 0.0, 128
    %55 = vxpose.xlu0.b32.cont [8/16] 0.0, 128
    %56 = vxpose.xlu0.b32.cont [9/16] 0.0, 128
    %57 = vxpose.xlu0.b32.cont [10/16] 0.0, 128
    %58 = vxpose.xlu0.b32.cont [11/16] 0.0, 128
    %59 = vxpose.xlu0.b32.cont [12/16] 0.0, 128
    %60 = vxpose.xlu0.b32.cont [13/16] 0.0, 128
    %61 = vxpose.xlu0.b32.cont [14/16] 0.0, 128
    %62 = vxpose.xlu0.b32.cont [15/16] 0.0, 128
    %63 = vxpose.xlu0.b32.end [16/16] 0.0, 128
    %v64 = vpop.trf.xlu0
    %v65 = vpop.trf.xlu0
    %v66 = vpop.trf.xlu0
    %v67 = vpop.trf.xlu0
    %v68 = vpop.trf.xlu0
    %v69 = vpop.trf.xlu0
    %v70 = vpop.trf.xlu0
    %v71 = vpop.trf.xlu0
    %v72 = vpop.trf.xlu0
    %v73 = vpop.trf.xlu0
    %v74 = vpop.trf.xlu0
    %v75 = vpop.trf.xlu0
    %v76 = vpop.trf.xlu0
    %v77 = vpop.trf.xlu0
    %v78 = vpop.trf.xlu0
    %v79 = vpop.trf.xlu0
    %vm80 = vcmask 64512
    %v82 = vsel %vm80, %v64, 0
    %v85 = vsel %vm80, %v65, 0
    %v88 = vsel %vm80, %v66, 0
    %v91 = vsel %vm80, %v67, 0
    %v94 = vsel %vm80, %v68, 0
    %v97 = vsel %vm80, %v69, 0
    %v100 = vsel %vm80, %v70, 0
    %v103 = vsel %vm80, %v71, 0
    %105 = vmatprep.subr.mxu0 0.0
    %v106 = vand.u32 %v40, 4294901760
    %107 = vmatpush1.msra.mxu0 %v106
    %108 = vmatprep.subr.mxu0 0.0
    %109 = vmatpush1.msra.mxu0 0.0
    %110 = vmatprep.subr.mxu0 0.0
    %111 = vmatpush1.msra.mxu0 0.0
    %112 = vmatprep.subr.mxu0 0.0
    %113 = vmatpush1.msra.mxu0 0.0
    %114 = vmatprep.subr.mxu0 0.0
    %115 = vmatpush1.msra.mxu0 0.0
    %116 = vmatprep.subr.mxu0 0.0
    %117 = vmatpush1.msra.mxu0 0.0
    %118 = vmatprep.subr.mxu0 0.0
    %119 = vmatpush1.msra.mxu0 0.0
    %120 = vmatprep.subr.mxu0 0.0
    %121 = vmatpush1.msra.mxu0 0.0
    %122 = vmatprep.subr.mxu0 0.0
    %123 = vmatpush1.msra.mxu0 0.0
    %124 = vmatprep.subr.mxu0 0.0
    %125 = vmatpush1.msra.mxu0 0.0
    %126 = vmatprep.subr.mxu0 0.0
    %127 = vmatpush1.msra.mxu0 0.0
    %128 = vmatprep.subr.mxu0 0.0
    %129 = vmatpush1.msra.mxu0 0.0
    %130 = vmatprep.subr.mxu0 0.0
    %131 = vmatpush1.msra.mxu0 0.0
    %132 = vmatprep.subr.mxu0 0.0
    %133 = vmatpush1.msra.mxu0 0.0
    %134 = vmatprep.subr.mxu0 0.0
    %135 = vmatpush1.msra.mxu0 0.0
    %136 = vmatprep.subr.mxu0 0.0
    %137 = vmatpush1.msra.mxu0 0.0
    %138 = vmatprep.subr.mxu0 0.0
    %139 = vmatpush1.msra.mxu0 0.0
    %140 = vmatprep.subr.mxu0 0.0
    %141 = vmatpush1.msra.mxu0 0.0
    %142 = vmatprep.subr.mxu0 0.0
    %143 = vmatpush1.msra.mxu0 0.0
    %144 = vmatprep.subr.mxu0 0.0
    %145 = vmatpush1.msra.mxu0 0.0
    %146 = vmatprep.subr.mxu0 0.0
    %147 = vmatpush1.msra.mxu0 0.0
    %148 = vmatprep.subr.mxu0 0.0
    %149 = vmatpush1.msra.mxu0 0.0
    %150 = vmatprep.subr.mxu0 0.0
    %151 = vmatpush1.msra.mxu0 0.0
    %152 = vmatprep.subr.mxu0 0.0
    %153 = vmatpush1.msra.mxu0 0.0
    %154 = vmatprep.subr.mxu0 0.0
    %155 = vmatpush1.msra.mxu0 0.0
    %156 = vmatprep.subr.mxu0 0.0
    %157 = vmatpush1.msra.mxu0 0.0
    %158 = vmatprep.subr.mxu0 0.0
    %159 = vmatpush1.msra.mxu0 0.0
    %160 = vmatprep.subr.mxu0 0.0
    %161 = vmatpush1.msra.mxu0 0.0
    %162 = vmatprep.subr.mxu0 0.0
    %163 = vmatpush1.msra.mxu0 0.0
    %164 = vmatprep.subr.mxu0 0.0
    %165 = vmatpush1.msra.mxu0 0.0
    %166 = vmatprep.subr.mxu0 0.0
    %167 = vmatpush1.msra.mxu0 0.0
    %168 = vmatprep.subr.mxu0 0.0
    %169 = vmatpush1.msra.mxu0 0.0
    %170 = vmatprep.mubr.f32.mxu0 0.0
    %v171 = vand.u32 %v82, 4294901760
    %v172 = vsub.f32 %v82, %v171
    %v173 = vand.u32 %v172, 4294901760
    %v174 = vsub.f32 %v172, %v173
    %v175 = vand.u32 %v174, 4294901760
    %176 = vmatmul.mubr.f32.gmra.mrb[0].mxu0 %v175
    %v177 = vpop.f32.mrb[0].mxu0
    %v178 = vadd.f32 %v46, %v177
    %v179 = vpop.f32.mrb[0].mxu0
    %180 = vmatprep.mubr.f32.mxu0 0.0
    %v181 = vand.u32 %v85, 4294901760
    %v182 = vsub.f32 %v85, %v181
    %v183 = vand.u32 %v182, 4294901760
    %v184 = vsub.f32 %v182, %v183
    %v185 = vand.u32 %v184, 4294901760
    %186 = vmatmul.mubr.f32.gmra.mrb[0].mxu0 %v185
    %v187 = vpop.f32.mrb[0].mxu0
    %v188 = vadd.f32 %v46, %v187
    %v189 = vpop.f32.mrb[0].mxu0
    %190 = vmatprep.mubr.f32.mxu0 0.0
    %v191 = vand.u32 %v88, 4294901760
    %v192 = vsub.f32 %v88, %v191
    %v193 = vand.u32 %v192, 4294901760
    %v194 = vsub.f32 %v192, %v193
    %v195 = vand.u32 %v194, 4294901760
    %196 = vmatmul.mubr.f32.gmra.mrb[0].mxu0 %v195
    %v197 = vpop.f32.mrb[0].mxu0
    %v198 = vadd.f32 %v46, %v197
    %v199 = vpop.f32.mrb[0].mxu0
    %200 = vmatprep.mubr.f32.mxu0 0.0
    %v201 = vand.u32 %v91, 4294901760
    %v202 = vsub.f32 %v91, %v201
    %v203 = vand.u32 %v202, 4294901760
    %v204 = vsub.f32 %v202, %v203
    %v205 = vand.u32 %v204, 4294901760
    %206 = vmatmul.mubr.f32.gmra.mrb[0].mxu0 %v205
    %v207 = vpop.f32.mrb[0].mxu0
    %v208 = vadd.f32 %v46, %v207
    %v209 = vpop.f32.mrb[0].mxu0
    %210 = vmatprep.mubr.f32.mxu0 0.0
    %v211 = vand.u32 %v94, 4294901760
    %v212 = vsub.f32 %v94, %v211
    %v213 = vand.u32 %v212, 4294901760
    %v214 = vsub.f32 %v212, %v213
    %v215 = vand.u32 %v214, 4294901760
    %216 = vmatmul.mubr.f32.gmra.mrb[0].mxu0 %v215
    %v217 = vpop.f32.mrb[0].mxu0
    %v218 = vadd.f32 %v46, %v217
    %v219 = vpop.f32.mrb[0].mxu0
    %220 = vmatprep.mubr.f32.mxu0 0.0
    %v221 = vand.u32 %v97, 4294901760
    %v222 = vsub.f32 %v97, %v221
    %v223 = vand.u32 %v222, 4294901760
    %v224 = vsub.f32 %v222, %v223
    %v225 = vand.u32 %v224, 4294901760
    %226 = vmatmul.mubr.f32.gmra.mrb[0].mxu0 %v225
    %v227 = vpop.f32.mrb[0].mxu0
    %v228 = vadd.f32 %v46, %v227
    %v229 = vpop.f32.mrb[0].mxu0
    %230 = vmatprep.mubr.f32.mxu0 0.0
    %v231 = vand.u32 %v100, 4294901760
    %v232 = vsub.f32 %v100, %v231
    %v233 = vand.u32 %v232, 4294901760
    %v234 = vsub.f32 %v232, %v233
    %v235 = vand.u32 %v234, 4294901760
    %236 = vmatmul.mubr.f32.gmra.mrb[0].mxu0 %v235
    %v237 = vpop.f32.mrb[0].mxu0
    %v238 = vadd.f32 %v46, %v237
    %v239 = vpop.f32.mrb[0].mxu0
    %240 = vmatprep.mubr.f32.mxu0 0.0
    %v241 = vand.u32 %v103, 4294901760
    %v242 = vsub.f32 %v103, %v241
    %v243 = vand.u32 %v242, 4294901760
    %v244 = vsub.f32 %v242, %v243
    %v245 = vand.u32 %v244, 4294901760
    %246 = vmatmul.mubr.f32.gmra.mrb[0].mxu0 %v245
    %v247 = vpop.f32.mrb[0].mxu0
    %v248 = vadd.f32 %v46, %v247
    %v249 = vpop.f32.mrb[0].mxu0
    %250 = vdwg.mxu0
    %251 = vmatprep.subr.mxu0 0.0
    %v252 = vand.u32 %v40, 4294901760
    %v253 = vsub.f32 %v40, %v252
    %v254 = vand.u32 %v253, 4294901760
    %v255 = vsub.f32 %v253, %v254
    %v256 = vand.u32 %v255, 4294901760
    %257 = vmatpush1.msra.mxu0 %v256
    %258 = vmatprep.subr.mxu0 0.0
    %259 = vmatpush1.msra.mxu0 0.0
    %260 = vmatprep.subr.mxu0 0.0
    %261 = vmatpush1.msra.mxu0 0.0
    %262 = vmatprep.subr.mxu0 0.0
    %263 = vmatpush1.msra.mxu0 0.0
    %264 = vmatprep.subr.mxu0 0.0
    %265 = vmatpush1.msra.mxu0 0.0
    %266 = vmatprep.subr.mxu0 0.0
    %267 = vmatpush1.msra.mxu0 0.0
    %268 = vmatprep.subr.mxu0 0.0
    %269 = vmatpush1.msra.mxu0 0.0
    %270 = vmatprep.subr.mxu0 0.0
    %271 = vmatpush1.msra.mxu0 0.0
    %272 = vmatprep.subr.mxu0 0.0
    %273 = vmatpush1.msra.mxu0 0.0
    %274 = vmatprep.subr.mxu0 0.0
    %275 = vmatpush1.msra.mxu0 0.0
    %276 = vmatprep.subr.mxu0 0.0
    %277 = vmatpush1.msra.mxu0 0.0
    %278 = vmatprep.subr.mxu0 0.0
    %279 = vmatpush1.msra.mxu0 0.0
    %280 = vmatprep.subr.mxu0 0.0
    %281 = vmatpush1.msra.mxu0 0.0
    %282 = vmatprep.subr.mxu0 0.0
    %283 = vmatpush1.msra.mxu0 0.0
    %284 = vmatprep.subr.mxu0 0.0
    %285 = vmatpush1.msra.mxu0 0.0
    %286 = vmatprep.subr.mxu0 0.0
    %287 = vmatpush1.msra.mxu0 0.0
    %288 = vmatprep.subr.mxu0 0.0
    %289 = vmatpush1.msra.mxu0 0.0
    %290 = vmatprep.subr.mxu0 0.0
    %291 = vmatpush1.msra.mxu0 0.0
    %292 = vmatprep.subr.mxu0 0.0
    %293 = vmatpush1.msra.mxu0 0.0
    %294 = vmatprep.subr.mxu0 0.0
    %295 = vmatpush1.msra.mxu0 0.0
    %296 = vmatprep.subr.mxu0 0.0
    %297 = vmatpush1.msra.mxu0 0.0
    %298 = vmatprep.subr.mxu0 0.0
    %299 = vmatpush1.msra.mxu0 0.0
    %300 = vmatprep.subr.mxu0 0.0
    %301 = vmatpush1.msra.mxu0 0.0
    %302 = vmatprep.subr.mxu0 0.0
    %303 = vmatpush1.msra.mxu0 0.0
    %304 = vmatprep.subr.mxu0 0.0
    %305 = vmatpush1.msra.mxu0 0.0
    %306 = vmatprep.subr.mxu0 0.0
    %307 = vmatpush1.msra.mxu0 0.0
    %308 = vmatprep.subr.mxu0 0.0
    %309 = vmatpush1.msra.mxu0 0.0
    %310 = vmatprep.subr.mxu0 0.0
    %311 = vmatpush1.msra.mxu0 0.0
    %312 = vmatprep.subr.mxu0 0.0
    %313 = vmatpush1.msra.mxu0 0.0
    %314 = vmatprep.subr.mxu0 0.0
    %315 = vmatpush1.msra.mxu0 0.0
    %316 = vmatprep.subr.mxu0 0.0
    %317 = vmatpush1.msra.mxu0 0.0
    %318 = vmatprep.subr.mxu0 0.0
    %319 = vmatpush1.msra.mxu0 0.0
    %320 = vmatprep.mubr.f32.mxu0 0.0
    %v321 = vand.u32 %v82, 4294901760
    %322 = vmatmul.mubr.f32.gmra.mrb[0].mxu0 %v321
    %v323 = vpop.f32.mrb[0].mxu0
    %v324 = vadd.f32 %v178, %v323
    %v325 = vpop.f32.mrb[0].mxu0
    %326 = vmatprep.mubr.f32.mxu0 0.0
    %v327 = vand.u32 %v85, 4294901760
    %328 = vmatmul.mubr.f32.gmra.mrb[0].mxu0 %v327
    %v329 = vpop.f32.mrb[0].mxu0
    %v330 = vadd.f32 %v188, %v329
    %v331 = vpop.f32.mrb[0].mxu0
    %332 = vmatprep.mubr.f32.mxu0 0.0
    %v333 = vand.u32 %v88, 4294901760
    %334 = vmatmul.mubr.f32.gmra.mrb[0].mxu0 %v333
    %v335 = vpop.f32.mrb[0].mxu0
    %v336 = vadd.f32 %v198, %v335
    %v337 = vpop.f32.mrb[0].mxu0
    %338 = vmatprep.mubr.f32.mxu0 0.0
    %v339 = vand.u32 %v91, 4294901760
    %340 = vmatmul.mubr.f32.gmra.mrb[0].mxu0 %v339
    %v341 = vpop.f32.mrb[0].mxu0
    %v342 = vadd.f32 %v208, %v341
    %v343 = vpop.f32.mrb[0].mxu0
    %344 = vmatprep.mubr.f32.mxu0 0.0
    %v345 = vand.u32 %v94, 4294901760
    %346 = vmatmul.mubr.f32.gmra.mrb[0].mxu0 %v345
    %v347 = vpop.f32.mrb[0].mxu0
    %v348 = vadd.f32 %v218, %v347
    %v349 = vpop.f32.mrb[0].mxu0
    %350 = vmatprep.mubr.f32.mxu0 0.0
    %v351 = vand.u32 %v97, 4294901760
    %352 = vmatmul.mubr.f32.gmra.mrb[0].mxu0 %v351
    %v353 = vpop.f32.mrb[0].mxu0
    %v354 = vadd.f32 %v228, %v353
    %v355 = vpop.f32.mrb[0].mxu0
    %356 = vmatprep.mubr.f32.mxu0 0.0
    %v357 = vand.u32 %v100, 4294901760
    %358 = vmatmul.mubr.f32.gmra.mrb[0].mxu0 %v357
    %v359 = vpop.f32.mrb[0].mxu0
    %v360 = vadd.f32 %v238, %v359
    %v361 = vpop.f32.mrb[0].mxu0
    %362 = vmatprep.mubr.f32.mxu0 0.0
    %v363 = vand.u32 %v103, 4294901760
    %364 = vmatmul.mubr.f32.gmra.mrb[0].mxu0 %v363
    %v365 = vpop.f32.mrb[0].mxu0
    %v366 = vadd.f32 %v248, %v365
    %v367 = vpop.f32.mrb[0].mxu0
    %368 = vdwg.mxu0
    %369 = vmatprep.subr.mxu0 0.0
    %v370 = vand.u32 %v40, 4294901760
    %v371 = vsub.f32 %v40, %v370
    %372 = vmatpush1.msra.mxu0 %v371
    %373 = vmatprep.subr.mxu0 0.0
    %374 = vmatpush1.msra.mxu0 0.0
    %375 = vmatprep.subr.mxu0 0.0
    %376 = vmatpush1.msra.mxu0 0.0
    %377 = vmatprep.subr.mxu0 0.0
    %378 = vmatpush1.msra.mxu0 0.0
    %379 = vmatprep.subr.mxu0 0.0
    %380 = vmatpush1.msra.mxu0 0.0
    %381 = vmatprep.subr.mxu0 0.0
    %382 = vmatpush1.msra.mxu0 0.0
    %383 = vmatprep.subr.mxu0 0.0
    %384 = vmatpush1.msra.mxu0 0.0
    %385 = vmatprep.subr.mxu0 0.0
    %386 = vmatpush1.msra.mxu0 0.0
    %387 = vmatprep.subr.mxu0 0.0
    %388 = vmatpush1.msra.mxu0 0.0
    %389 = vmatprep.subr.mxu0 0.0
    %390 = vmatpush1.msra.mxu0 0.0
    %391 = vmatprep.subr.mxu0 0.0
    %392 = vmatpush1.msra.mxu0 0.0
    %393 = vmatprep.subr.mxu0 0.0
    %394 = vmatpush1.msra.mxu0 0.0
    %395 = vmatprep.subr.mxu0 0.0
    %396 = vmatpush1.msra.mxu0 0.0
    %397 = vmatprep.subr.mxu0 0.0
    %398 = vmatpush1.msra.mxu0 0.0
    %399 = vmatprep.subr.mxu0 0.0
    %400 = vmatpush1.msra.mxu0 0.0
    %401 = vmatprep.subr.mxu0 0.0
    %402 = vmatpush1.msra.mxu0 0.0
    %403 = vmatprep.subr.mxu0 0.0
    %404 = vmatpush1.msra.mxu0 0.0
    %405 = vmatprep.subr.mxu0 0.0
    %406 = vmatpush1.msra.mxu0 0.0
    %407 = vmatprep.subr.mxu0 0.0
    %408 = vmatpush1.msra.mxu0 0.0
    %409 = vmatprep.subr.mxu0 0.0
    %410 = vmatpush1.msra.mxu0 0.0
    %411 = vmatprep.subr.mxu0 0.0
    %412 = vmatpush1.msra.mxu0 0.0
    %413 = vmatprep.subr.mxu0 0.0
    %414 = vmatpush1.msra.mxu0 0.0
    %415 = vmatprep.subr.mxu0 0.0
    %416 = vmatpush1.msra.mxu0 0.0
    %417 = vmatprep.subr.mxu0 0.0
    %418 = vmatpush1.msra.mxu0 0.0
    %419 = vmatprep.subr.mxu0 0.0
    %420 = vmatpush1.msra.mxu0 0.0
    %421 = vmatprep.subr.mxu0 0.0
    %422 = vmatpush1.msra.mxu0 0.0
    %423 = vmatprep.subr.mxu0 0.0
    %424 = vmatpush1.msra.mxu0 0.0
    %425 = vmatprep.subr.mxu0 0.0
    %426 = vmatpush1.msra.mxu0 0.0
    %427 = vmatprep.subr.mxu0 0.0
    %428 = vmatpush1.msra.mxu0 0.0
    %429 = vmatprep.subr.mxu0 0.0
    %430 = vmatpush1.msra.mxu0 0.0
    %431 = vmatprep.subr.mxu0 0.0
    %432 = vmatpush1.msra.mxu0 0.0
    %433 = vmatprep.subr.mxu0 0.0
    %434 = vmatpush1.msra.mxu0 0.0
    %435 = vmatprep.mubr.f32.mxu0 0.0
    %v436 = vand.u32 %v82, 4294901760
    %v437 = vsub.f32 %v82, %v436
    %438 = vmatmul.mubr.f32.gmra.mrb[0].mxu0 %v437
    %v439 = vpop.f32.mrb[0].mxu0
    %v440 = vadd.f32 %v324, %v439
    %v441 = vpop.f32.mrb[0].mxu0
    %442 = vmatprep.mubr.f32.mxu0 0.0
    %v443 = vand.u32 %v85, 4294901760
    %v444 = vsub.f32 %v85, %v443
    %445 = vmatmul.mubr.f32.gmra.mrb[0].mxu0 %v444
    %v446 = vpop.f32.mrb[0].mxu0
    %v447 = vadd.f32 %v330, %v446
    %v448 = vpop.f32.mrb[0].mxu0
    %449 = vmatprep.mubr.f32.mxu0 0.0
    %v450 = vand.u32 %v88, 4294901760
    %v451 = vsub.f32 %v88, %v450
    %452 = vmatmul.mubr.f32.gmra.mrb[0].mxu0 %v451
    %v453 = vpop.f32.mrb[0].mxu0
    %v454 = vadd.f32 %v336, %v453
    %v455 = vpop.f32.mrb[0].mxu0
    %456 = vmatprep.mubr.f32.mxu0 0.0
    %v457 = vand.u32 %v91, 4294901760
    %v458 = vsub.f32 %v91, %v457
    %459 = vmatmul.mubr.f32.gmra.mrb[0].mxu0 %v458
    %v460 = vpop.f32.mrb[0].mxu0
    %v461 = vadd.f32 %v342, %v460
    %v462 = vpop.f32.mrb[0].mxu0
    %463 = vmatprep.mubr.f32.mxu0 0.0
    %v464 = vand.u32 %v94, 4294901760
    %v465 = vsub.f32 %v94, %v464
    %466 = vmatmul.mubr.f32.gmra.mrb[0].mxu0 %v465
    %v467 = vpop.f32.mrb[0].mxu0
    %v468 = vadd.f32 %v348, %v467
    %v469 = vpop.f32.mrb[0].mxu0
    %470 = vmatprep.mubr.f32.mxu0 0.0
    %v471 = vand.u32 %v97, 4294901760
    %v472 = vsub.f32 %v97, %v471
    %473 = vmatmul.mubr.f32.gmra.mrb[0].mxu0 %v472
    %v474 = vpop.f32.mrb[0].mxu0
    %v475 = vadd.f32 %v354, %v474
    %v476 = vpop.f32.mrb[0].mxu0
    %477 = vmatprep.mubr.f32.mxu0 0.0
    %v478 = vand.u32 %v100, 4294901760
    %v479 = vsub.f32 %v100, %v478
    %480 = vmatmul.mubr.f32.gmra.mrb[0].mxu0 %v479
    %v481 = vpop.f32.mrb[0].mxu0
    %v482 = vadd.f32 %v360, %v481
    %v483 = vpop.f32.mrb[0].mxu0
    %484 = vmatprep.mubr.f32.mxu0 0.0
    %v485 = vand.u32 %v103, 4294901760
    %v486 = vsub.f32 %v103, %v485
    %487 = vmatmul.mubr.f32.gmra.mrb[0].mxu0 %v486
    %v488 = vpop.f32.mrb[0].mxu0
    %v489 = vadd.f32 %v366, %v488
    %v490 = vpop.f32.mrb[0].mxu0
    %491 = vdwg.mxu0
    %492 = vmatprep.subr.mxu0 0.0
    %v493 = vand.u32 %v40, 4294901760
    %494 = vmatpush1.msra.mxu0 %v493
    %495 = vmatprep.subr.mxu0 0.0
    %496 = vmatpush1.msra.mxu0 0.0
    %497 = vmatprep.subr.mxu0 0.0
    %498 = vmatpush1.msra.mxu0 0.0
    %499 = vmatprep.subr.mxu0 0.0
    %500 = vmatpush1.msra.mxu0 0.0
    %501 = vmatprep.subr.mxu0 0.0
    %502 = vmatpush1.msra.mxu0 0.0
    %503 = vmatprep.subr.mxu0 0.0
    %504 = vmatpush1.msra.mxu0 0.0
    %505 = vmatprep.subr.mxu0 0.0
    %506 = vmatpush1.msra.mxu0 0.0
    %507 = vmatprep.subr.mxu0 0.0
    %508 = vmatpush1.msra.mxu0 0.0
    %509 = vmatprep.subr.mxu0 0.0
    %510 = vmatpush1.msra.mxu0 0.0
    %511 = vmatprep.subr.mxu0 0.0
    %512 = vmatpush1.msra.mxu0 0.0
    %513 = vmatprep.subr.mxu0 0.0
    %514 = vmatpush1.msra.mxu0 0.0
    %515 = vmatprep.subr.mxu0 0.0
    %516 = vmatpush1.msra.mxu0 0.0
    %517 = vmatprep.subr.mxu0 0.0
    %518 = vmatpush1.msra.mxu0 0.0
    %519 = vmatprep.subr.mxu0 0.0
    %520 = vmatpush1.msra.mxu0 0.0
    %521 = vmatprep.subr.mxu0 0.0
    %522 = vmatpush1.msra.mxu0 0.0
    %523 = vmatprep.subr.mxu0 0.0
    %524 = vmatpush1.msra.mxu0 0.0
    %525 = vmatprep.subr.mxu0 0.0
    %526 = vmatpush1.msra.mxu0 0.0
    %527 = vmatprep.subr.mxu0 0.0
    %528 = vmatpush1.msra.mxu0 0.0
    %529 = vmatprep.subr.mxu0 0.0
    %530 = vmatpush1.msra.mxu0 0.0
    %531 = vmatprep.subr.mxu0 0.0
    %532 = vmatpush1.msra.mxu0 0.0
    %533 = vmatprep.subr.mxu0 0.0
    %534 = vmatpush1.msra.mxu0 0.0
    %535 = vmatprep.subr.mxu0 0.0
    %536 = vmatpush1.msra.mxu0 0.0
    %537 = vmatprep.subr.mxu0 0.0
    %538 = vmatpush1.msra.mxu0 0.0
    %539 = vmatprep.subr.mxu0 0.0
    %540 = vmatpush1.msra.mxu0 0.0
    %541 = vmatprep.subr.mxu0 0.0
    %542 = vmatpush1.msra.mxu0 0.0
    %543 = vmatprep.subr.mxu0 0.0
    %544 = vmatpush1.msra.mxu0 0.0
    %545 = vmatprep.subr.mxu0 0.0
    %546 = vmatpush1.msra.mxu0 0.0
    %547 = vmatprep.subr.mxu0 0.0
    %548 = vmatpush1.msra.mxu0 0.0
    %549 = vmatprep.subr.mxu0 0.0
    %550 = vmatpush1.msra.mxu0 0.0
    %551 = vmatprep.subr.mxu0 0.0
    %552 = vmatpush1.msra.mxu0 0.0
    %553 = vmatprep.subr.mxu0 0.0
    %554 = vmatpush1.msra.mxu0 0.0
    %555 = vmatprep.subr.mxu0 0.0
    %556 = vmatpush1.msra.mxu0 0.0
    %557 = vmatprep.mubr.f32.mxu0 0.0
    %v558 = vand.u32 %v82, 4294901760
    %v559 = vsub.f32 %v82, %v558
    %v560 = vand.u32 %v559, 4294901760
    %561 = vmatmul.mubr.f32.gmra.mrb[0].mxu0 %v560
    %v562 = vpop.f32.mrb[0].mxu0
    %v563 = vadd.f32 %v440, %v562
    %v564 = vpop.f32.mrb[0].mxu0
    %565 = vmatprep.mubr.f32.mxu0 0.0
    %v566 = vand.u32 %v85, 4294901760
    %v567 = vsub.f32 %v85, %v566
    %v568 = vand.u32 %v567, 4294901760
    %569 = vmatmul.mubr.f32.gmra.mrb[0].mxu0 %v568
    %v570 = vpop.f32.mrb[0].mxu0
    %v571 = vadd.f32 %v447, %v570
    %v572 = vpop.f32.mrb[0].mxu0
    %573 = vmatprep.mubr.f32.mxu0 0.0
    %v574 = vand.u32 %v88, 4294901760
    %v575 = vsub.f32 %v88, %v574
    %v576 = vand.u32 %v575, 4294901760
    %577 = vmatmul.mubr.f32.gmra.mrb[0].mxu0 %v576
    %v578 = vpop.f32.mrb[0].mxu0
    %v579 = vadd.f32 %v454, %v578
    %v580 = vpop.f32.mrb[0].mxu0
    %581 = vmatprep.mubr.f32.mxu0 0.0
    %v582 = vand.u32 %v91, 4294901760
    %v583 = vsub.f32 %v91, %v582
    %v584 = vand.u32 %v583, 4294901760
    %585 = vmatmul.mubr.f32.gmra.mrb[0].mxu0 %v584
    %v586 = vpop.f32.mrb[0].mxu0
    %v587 = vadd.f32 %v461, %v586
    %v588 = vpop.f32.mrb[0].mxu0
    %589 = vmatprep.mubr.f32.mxu0 0.0
    %v590 = vand.u32 %v94, 4294901760
    %v591 = vsub.f32 %v94, %v590
    %v592 = vand.u32 %v591, 4294901760
    %593 = vmatmul.mubr.f32.gmra.mrb[0].mxu0 %v592
    %v594 = vpop.f32.mrb[0].mxu0
    %v595 = vadd.f32 %v468, %v594
    %v596 = vpop.f32.mrb[0].mxu0
    %597 = vmatprep.mubr.f32.mxu0 0.0
    %v598 = vand.u32 %v97, 4294901760
    %v599 = vsub.f32 %v97, %v598
    %v600 = vand.u32 %v599, 4294901760
    %601 = vmatmul.mubr.f32.gmra.mrb[0].mxu0 %v600
    %v602 = vpop.f32.mrb[0].mxu0
    %v603 = vadd.f32 %v475, %v602
    %v604 = vpop.f32.mrb[0].mxu0
    %605 = vmatprep.mubr.f32.mxu0 0.0
    %v606 = vand.u32 %v100, 4294901760
    %v607 = vsub.f32 %v100, %v606
    %v608 = vand.u32 %v607, 4294901760
    %609 = vmatmul.mubr.f32.gmra.mrb[0].mxu0 %v608
    %v610 = vpop.f32.mrb[0].mxu0
    %v611 = vadd.f32 %v482, %v610
    %v612 = vpop.f32.mrb[0].mxu0
    %613 = vmatprep.mubr.f32.mxu0 0.0
    %v614 = vand.u32 %v103, 4294901760
    %v615 = vsub.f32 %v103, %v614
    %v616 = vand.u32 %v615, 4294901760
    %617 = vmatmul.mubr.f32.gmra.mrb[0].mxu0 %v616
    %v618 = vpop.f32.mrb[0].mxu0
    %v619 = vadd.f32 %v489, %v618
    %v620 = vpop.f32.mrb[0].mxu0
    %621 = vdwg.mxu0
    %622 = vmatprep.subr.mxu0 0.0
    %v623 = vand.u32 %v40, 4294901760
    %v624 = vsub.f32 %v40, %v623
    %v625 = vand.u32 %v624, 4294901760
    %626 = vmatpush1.msra.mxu0 %v625
    %627 = vmatprep.subr.mxu0 0.0
    %628 = vmatpush1.msra.mxu0 0.0
    %629 = vmatprep.subr.mxu0 0.0
    %630 = vmatpush1.msra.mxu0 0.0
    %631 = vmatprep.subr.mxu0 0.0
    %632 = vmatpush1.msra.mxu0 0.0
    %633 = vmatprep.subr.mxu0 0.0
    %634 = vmatpush1.msra.mxu0 0.0
    %635 = vmatprep.subr.mxu0 0.0
    %636 = vmatpush1.msra.mxu0 0.0
    %637 = vmatprep.subr.mxu0 0.0
    %638 = vmatpush1.msra.mxu0 0.0
    %639 = vmatprep.subr.mxu0 0.0
    %640 = vmatpush1.msra.mxu0 0.0
    %641 = vmatprep.subr.mxu0 0.0
    %642 = vmatpush1.msra.mxu0 0.0
    %643 = vmatprep.subr.mxu0 0.0
    %644 = vmatpush1.msra.mxu0 0.0
    %645 = vmatprep.subr.mxu0 0.0
    %646 = vmatpush1.msra.mxu0 0.0
    %647 = vmatprep.subr.mxu0 0.0
    %648 = vmatpush1.msra.mxu0 0.0
    %649 = vmatprep.subr.mxu0 0.0
    %650 = vmatpush1.msra.mxu0 0.0
    %651 = vmatprep.subr.mxu0 0.0
    %652 = vmatpush1.msra.mxu0 0.0
    %653 = vmatprep.subr.mxu0 0.0
    %654 = vmatpush1.msra.mxu0 0.0
    %655 = vmatprep.subr.mxu0 0.0
    %656 = vmatpush1.msra.mxu0 0.0
    %657 = vmatprep.subr.mxu0 0.0
    %658 = vmatpush1.msra.mxu0 0.0
    %659 = vmatprep.subr.mxu0 0.0
    %660 = vmatpush1.msra.mxu0 0.0
    %661 = vmatprep.subr.mxu0 0.0
    %662 = vmatpush1.msra.mxu0 0.0
    %663 = vmatprep.subr.mxu0 0.0
    %664 = vmatpush1.msra.mxu0 0.0
    %665 = vmatprep.subr.mxu0 0.0
    %666 = vmatpush1.msra.mxu0 0.0
    %667 = vmatprep.subr.mxu0 0.0
    %668 = vmatpush1.msra.mxu0 0.0
    %669 = vmatprep.subr.mxu0 0.0
    %670 = vmatpush1.msra.mxu0 0.0
    %671 = vmatprep.subr.mxu0 0.0
    %672 = vmatpush1.msra.mxu0 0.0
    %673 = vmatprep.subr.mxu0 0.0
    %674 = vmatpush1.msra.mxu0 0.0
    %675 = vmatprep.subr.mxu0 0.0
    %676 = vmatpush1.msra.mxu0 0.0
    %677 = vmatprep.subr.mxu0 0.0
    %678 = vmatpush1.msra.mxu0 0.0
    %679 = vmatprep.subr.mxu0 0.0
    %680 = vmatpush1.msra.mxu0 0.0
    %681 = vmatprep.subr.mxu0 0.0
    %682 = vmatpush1.msra.mxu0 0.0
    %683 = vmatprep.subr.mxu0 0.0
    %684 = vmatpush1.msra.mxu0 0.0
    %685 = vmatprep.subr.mxu0 0.0
    %686 = vmatpush1.msra.mxu0 0.0
    %687 = vmatprep.subr.mxu0 0.0
    %688 = vmatpush1.msra.mxu0 0.0
    %689 = vmatprep.mubr.f32.mxu0 0.0
    %v690 = vand.u32 %v82, 4294901760
    %691 = vmatmul.mubr.f32.gmra.mrb[0].mxu0 %v690
    %v692 = vpop.f32.mrb[0].mxu0
    %v693 = vadd.f32 %v563, %v692
    %v694 = vpop.f32.mrb[0].mxu0
    %695 = vmatprep.mubr.f32.mxu0 0.0
    %v696 = vand.u32 %v85, 4294901760
    %697 = vmatmul.mubr.f32.gmra.mrb[0].mxu0 %v696
    %v698 = vpop.f32.mrb[0].mxu0
    %v699 = vadd.f32 %v571, %v698
    %v700 = vpop.f32.mrb[0].mxu0
    %701 = vmatprep.mubr.f32.mxu0 0.0
    %v702 = vand.u32 %v88, 4294901760
    %703 = vmatmul.mubr.f32.gmra.mrb[0].mxu0 %v702
    %v704 = vpop.f32.mrb[0].mxu0
    %v705 = vadd.f32 %v579, %v704
    %v706 = vpop.f32.mrb[0].mxu0
    %707 = vmatprep.mubr.f32.mxu0 0.0
    %v708 = vand.u32 %v91, 4294901760
    %709 = vmatmul.mubr.f32.gmra.mrb[0].mxu0 %v708
    %v710 = vpop.f32.mrb[0].mxu0
    %v711 = vadd.f32 %v587, %v710
    %v712 = vpop.f32.mrb[0].mxu0
    %713 = vmatprep.mubr.f32.mxu0 0.0
    %v714 = vand.u32 %v94, 4294901760
    %715 = vmatmul.mubr.f32.gmra.mrb[0].mxu0 %v714
    %v716 = vpop.f32.mrb[0].mxu0
    %v717 = vadd.f32 %v595, %v716
    %v718 = vpop.f32.mrb[0].mxu0
    %719 = vmatprep.mubr.f32.mxu0 0.0
    %v720 = vand.u32 %v97, 4294901760
    %721 = vmatmul.mubr.f32.gmra.mrb[0].mxu0 %v720
    %v722 = vpop.f32.mrb[0].mxu0
    %v723 = vadd.f32 %v603, %v722
    %v724 = vpop.f32.mrb[0].mxu0
    %725 = vmatprep.mubr.f32.mxu0 0.0
    %v726 = vand.u32 %v100, 4294901760
    %727 = vmatmul.mubr.f32.gmra.mrb[0].mxu0 %v726
    %v728 = vpop.f32.mrb[0].mxu0
    %v729 = vadd.f32 %v611, %v728
    %v730 = vpop.f32.mrb[0].mxu0
    %731 = vmatprep.mubr.f32.mxu0 0.0
    %v732 = vand.u32 %v103, 4294901760
    %733 = vmatmul.mubr.f32.gmra.mrb[0].mxu0 %v732
    %v734 = vpop.f32.mrb[0].mxu0
    %v735 = vadd.f32 %v619, %v734
    %v736 = vpop.f32.mrb[0].mxu0
    %737 = vdwg.mxu0
    %738 = vmatprep.subr.mxu0 0.0
    %v739 = vand.u32 %v40, 4294901760
    %740 = vmatpush1.msra.mxu0 %v739
    %741 = vmatprep.subr.mxu0 0.0
    %742 = vmatpush1.msra.mxu0 0.0
    %743 = vmatprep.subr.mxu0 0.0
    %744 = vmatpush1.msra.mxu0 0.0
    %745 = vmatprep.subr.mxu0 0.0
    %746 = vmatpush1.msra.mxu0 0.0
    %747 = vmatprep.subr.mxu0 0.0
    %748 = vmatpush1.msra.mxu0 0.0
    %749 = vmatprep.subr.mxu0 0.0
    %750 = vmatpush1.msra.mxu0 0.0
    %751 = vmatprep.subr.mxu0 0.0
    %752 = vmatpush1.msra.mxu0 0.0
    %753 = vmatprep.subr.mxu0 0.0
    %754 = vmatpush1.msra.mxu0 0.0
    %755 = vmatprep.subr.mxu0 0.0
    %756 = vmatpush1.msra.mxu0 0.0
    %757 = vmatprep.subr.mxu0 0.0
    %758 = vmatpush1.msra.mxu0 0.0
    %759 = vmatprep.subr.mxu0 0.0
    %760 = vmatpush1.msra.mxu0 0.0
    %761 = vmatprep.subr.mxu0 0.0
    %762 = vmatpush1.msra.mxu0 0.0
    %763 = vmatprep.subr.mxu0 0.0
    %764 = vmatpush1.msra.mxu0 0.0
    %765 = vmatprep.subr.mxu0 0.0
    %766 = vmatpush1.msra.mxu0 0.0
    %767 = vmatprep.subr.mxu0 0.0
    %768 = vmatpush1.msra.mxu0 0.0
    %769 = vmatprep.subr.mxu0 0.0
    %770 = vmatpush1.msra.mxu0 0.0
    %771 = vmatprep.subr.mxu0 0.0
    %772 = vmatpush1.msra.mxu0 0.0
    %773 = vmatprep.subr.mxu0 0.0
    %774 = vmatpush1.msra.mxu0 0.0
    %775 = vmatprep.subr.mxu0 0.0
    %776 = vmatpush1.msra.mxu0 0.0
    %777 = vmatprep.subr.mxu0 0.0
    %778 = vmatpush1.msra.mxu0 0.0
    %779 = vmatprep.subr.mxu0 0.0
    %780 = vmatpush1.msra.mxu0 0.0
    %781 = vmatprep.subr.mxu0 0.0
    %782 = vmatpush1.msra.mxu0 0.0
    %783 = vmatprep.subr.mxu0 0.0
    %784 = vmatpush1.msra.mxu0 0.0
    %785 = vmatprep.subr.mxu0 0.0
    %786 = vmatpush1.msra.mxu0 0.0
    %787 = vmatprep.subr.mxu0 0.0
    %788 = vmatpush1.msra.mxu0 0.0
    %789 = vmatprep.subr.mxu0 0.0
    %790 = vmatpush1.msra.mxu0 0.0
    %791 = vmatprep.subr.mxu0 0.0
    %792 = vmatpush1.msra.mxu0 0.0
    %793 = vmatprep.subr.mxu0 0.0
    %794 = vmatpush1.msra.mxu0 0.0
    %795 = vmatprep.subr.mxu0 0.0
    %796 = vmatpush1.msra.mxu0 0.0
    %797 = vmatprep.subr.mxu0 0.0
    %798 = vmatpush1.msra.mxu0 0.0
    %799 = vmatprep.subr.mxu0 0.0
    %800 = vmatpush1.msra.mxu0 0.0
    %801 = vmatprep.subr.mxu0 0.0
    %802 = vmatpush1.msra.mxu0 0.0
    %803 = vmatprep.mubr.f32.mxu0 0.0
    %v804 = vand.u32 %v82, 4294901760
    %805 = vmatmul.mubr.f32.gmra.mrb[0].mxu0 %v804
    %v806 = vpop.f32.mrb[0].mxu0
    %v807 = vadd.f32 %v693, %v806
    %v808 = vpop.f32.mrb[0].mxu0
    %809 = vmatprep.mubr.f32.mxu0 0.0
    %v810 = vand.u32 %v85, 4294901760
    %811 = vmatmul.mubr.f32.gmra.mrb[0].mxu0 %v810
    %v812 = vpop.f32.mrb[0].mxu0
    %v813 = vadd.f32 %v699, %v812
    %v814 = vpop.f32.mrb[0].mxu0
    %815 = vmatprep.mubr.f32.mxu0 0.0
    %v816 = vand.u32 %v88, 4294901760
    %817 = vmatmul.mubr.f32.gmra.mrb[0].mxu0 %v816
    %v818 = vpop.f32.mrb[0].mxu0
    %v819 = vadd.f32 %v705, %v818
    %v820 = vpop.f32.mrb[0].mxu0
    %821 = vmatprep.mubr.f32.mxu0 0.0
    %v822 = vand.u32 %v91, 4294901760
    %823 = vmatmul.mubr.f32.gmra.mrb[0].mxu0 %v822
    %v824 = vpop.f32.mrb[0].mxu0
    %v825 = vadd.f32 %v711, %v824
    %v826 = vpop.f32.mrb[0].mxu0
    %827 = vmatprep.mubr.f32.mxu0 0.0
    %v828 = vand.u32 %v94, 4294901760
    %829 = vmatmul.mubr.f32.gmra.mrb[0].mxu0 %v828
    %v830 = vpop.f32.mrb[0].mxu0
    %v831 = vadd.f32 %v717, %v830
    %v832 = vpop.f32.mrb[0].mxu0
    %833 = vmatprep.mubr.f32.mxu0 0.0
    %v834 = vand.u32 %v97, 4294901760
    %835 = vmatmul.mubr.f32.gmra.mrb[0].mxu0 %v834
    %v836 = vpop.f32.mrb[0].mxu0
    %v837 = vadd.f32 %v723, %v836
    %v838 = vpop.f32.mrb[0].mxu0
    %839 = vmatprep.mubr.f32.mxu0 0.0
    %v840 = vand.u32 %v100, 4294901760
    %841 = vmatmul.mubr.f32.gmra.mrb[0].mxu0 %v840
    %v842 = vpop.f32.mrb[0].mxu0
    %v843 = vadd.f32 %v729, %v842
    %v844 = vpop.f32.mrb[0].mxu0
    %845 = vmatprep.mubr.f32.mxu0 0.0
    %v846 = vand.u32 %v103, 4294901760
    %847 = vmatmul.mubr.f32.gmra.mrb[0].mxu0 %v846
    %v848 = vpop.f32.mrb[0].mxu0
    %v849 = vadd.f32 %v735, %v848
    %v850 = vpop.f32.mrb[0].mxu0
    %851 = vdwg.mxu0
    %v852 = vand.u32 2147483647, %v807
    %vm853 = vcmp.le.f32.partialorder %v852, 0.7853982
    %vm854 = vcmp.lt.s32.totalorder %v807, 0
    %v855 = vand.u32 %v807, 2139095040
    %v856 = vshrl.u32 %v855, 23
    %v857 = vsub.s32 %v856, 127
    %v858 = vand.u32 2147483647, %v807
    %v859 = vand.u32 %v858, 8388607
    %v860 = vor.u32 %v859, 8388608
    %v861 = vsub.s32 0, %v860
    %v862 = vadd.s32 %v857, 1
    %vm863 = vcmp.gt.s32.totalorder %v862, 0
    %v864 = vsel %vm863, %v862, 0
    %v865 = vshrl.u32 %v864, 5
    %v866 = vand.u32 %v864, 31
    %v867 = vsub.s32 32, %v866
    %v868 = vshrl.u32 683565275, %v867
    %v869 = vshll.u32 683565275, %v866
    %v870 = vshrl.u32 2475754826, %v867
    %v871 = vor.u32 %v869, %v870
    %v872 = vshll.u32 2475754826, %v866
    %v873 = vshrl.u32 2131351028, %v867
    %v874 = vor.u32 %v872, %v873
    %v875 = vshll.u32 2131351028, %v866
    %v876 = vshrl.u32 2102212464, %v867
    %v877 = vor.u32 %v875, %v876
    %v878 = vshll.u32 2102212464, %v866
    %v879 = vshrl.u32 920167782, %v867
    %v880 = vor.u32 %v878, %v879
    %v881 = vshll.u32 920167782, %v866
    %v882 = vshrl.u32 1326507024, %v867
    %v883 = vor.u32 %v881, %v882
    %vm884 = vcmp.lt.s32.totalorder %v865, 1
    %vm885 = vcmp.lt.s32.totalorder %v865, 2
    %vm886 = vcmp.lt.s32.totalorder %v865, 3
    %vm887 = vcmp.lt.s32.totalorder %v865, 4
    %v888 = vsel %vm884, %v868, %v871
    %v889 = vsel %vm887, %v877, 2102212464
    %v890 = vsel %vm886, %v874, %v889
    %v891 = vsel %vm885, %v888, %v890
    %v892 = vsel %vm884, %v871, %v874
    %v893 = vsel %vm887, %v880, 920167782
    %v894 = vsel %vm886, %v877, %v893
    %v895 = vsel %vm885, %v892, %v894
    %v896 = vsel %vm884, %v874, %v877
    %v897 = vsel %vm887, %v883, 1326507024
    %v898 = vsel %vm886, %v880, %v897
    %v899 = vsel %vm885, %v896, %v898
    %v900 = vshll.u32 %v860, 8
    %v901 = vmul.u32.u64.compose %v900, %v899
    %v902 = vextract.low.u32 %v901
    %v903 = vextract.high.u32 %v901
    %v904 = vmul.u32.u64.compose %v900, %v895
    %v905 = vextract.low.u32 %v904
    %v906 = vextract.high.u32 %v904
    %v907 = vmul.u32 %v900, %v891
    %v908 = vadd.s32 %v903, %v905
    %vm909 = vc.u32 %v903, %v905
    %v910 = vadd.s32 %v906, 1
    %v911 = vsel %vm909, %v910, %v906
    %v912 = vadd.s32 %v907, %v911
    %v913 = vadd.s32 %v912, 536870912
    %v914 = vshrl.u32 %v913, 30
    %v915 = vshll.u32 %v914, 30
    %v916 = vsub.s32 %v912, %v915
    %vm917 = vcmp.lt.s32.totalorder %v916, 0
    %v918 = vsub.s32 0, %v916
    %v919 = vsel %vm917, %v918, %v916
    %v920 = vclz %v919
    %v921 = vsub.s32 %v920, 2
    %vm922 = vcmp.gt.s32.totalorder 0, %v921
    %v923 = vsel %vm922, 0, %v921
    %v924 = vsub.s32 32, %v923
    %v925 = vshll.u32 %v916, %v923
    %v926 = vshrl.u32 %v908, %v924
    %v927 = vor.u32 %v925, %v926
    %v928 = vsub.s32 4294967266, %v923
    %v929 = vadd.s32 %v928, 127
    %v930 = vshll.u32 %v929, 23
    %v931 = vor.u32 4788187, %v930
    %v932 = vand.u32 2147483647, %v931
    %v934 = vcvt.s32.f32 %v927
    %v935 = vmul.f32 %v934, %v932
    %v936 = vxor.u32 %v935, 2147483648
    %v937 = vsel %vm854, %v936, %v935
    %v938 = vsub.s32 4, %v914
    %v939 = vsel %vm854, %v938, %v914
    %v940 = vsel %vm853, %v807, %v937
    %v941 = vsel %vm853, 0, %v939
    %v942 = vcosq.f32.pop %v940
    %v943 = vsinq.f32.pop %v940
    %vm944 = vweird.f32 %v807
    %v945 = vadd.s32 %v941, 3
    %v946 = vand.u32 %v945, 3
    %vm947 = vcmp.lt.s32.totalorder %v946, 2
    %vm948 = vcmp.eq.s32.totalorder %v946, 0
    %v949 = vxor.u32 %v943, 2147483648
    %v950 = vsel %vm948, %v942, %v949
    %vm951 = vcmp.eq.s32.totalorder %v946, 2
    %v952 = vxor.u32 %v942, 2147483648
    %v953 = vsel %vm951, %v952, %v943
    %v954 = vsel %vm947, %v950, %v953
    %v955 = vsel %vm944, nan, %v954
    %v956 = vand.u32 2147483647, %v813
    %vm957 = vcmp.le.f32.partialorder %v956, 0.7853982
    %vm958 = vcmp.lt.s32.totalorder %v813, 0
    %v959 = vand.u32 %v813, 2139095040
    %v960 = vshrl.u32 %v959, 23
    %v961 = vsub.s32 %v960, 127
    %v962 = vand.u32 2147483647, %v813
    %v963 = vand.u32 %v962, 8388607
    %v964 = vor.u32 %v963, 8388608
    %v965 = vsub.s32 0, %v964
    %v966 = vadd.s32 %v961, 1
    %vm967 = vcmp.gt.s32.totalorder %v966, 0
    %v968 = vsel %vm967, %v966, 0
    %v969 = vshrl.u32 %v968, 5
    %v970 = vand.u32 %v968, 31
    %v971 = vsub.s32 32, %v970
    %v972 = vshrl.u32 683565275, %v971
    %v973 = vshll.u32 683565275, %v970
    %v974 = vshrl.u32 2475754826, %v971
    %v975 = vor.u32 %v973, %v974
    %v976 = vshll.u32 2475754826, %v970
    %v977 = vshrl.u32 2131351028, %v971
    %v978 = vor.u32 %v976, %v977
    %v979 = vshll.u32 2131351028, %v970
    %v980 = vshrl.u32 2102212464, %v971
    %v981 = vor.u32 %v979, %v980
    %v982 = vshll.u32 2102212464, %v970
    %v983 = vshrl.u32 920167782, %v971
    %v984 = vor.u32 %v982, %v983
    %v985 = vshll.u32 920167782, %v970
    %v986 = vshrl.u32 1326507024, %v971
    %v987 = vor.u32 %v985, %v986
    %vm988 = vcmp.lt.s32.totalorder %v969, 1
    %vm989 = vcmp.lt.s32.totalorder %v969, 2
    %vm990 = vcmp.lt.s32.totalorder %v969, 3
    %vm991 = vcmp.lt.s32.totalorder %v969, 4
    %v992 = vsel %vm988, %v972, %v975
    %v993 = vsel %vm991, %v981, 2102212464
    %v994 = vsel %vm990, %v978, %v993
    %v995 = vsel %vm989, %v992, %v994
    %v996 = vsel %vm988, %v975, %v978
    %v997 = vsel %vm991, %v984, 920167782
    %v998 = vsel %vm990, %v981, %v997
    %v999 = vsel %vm989, %v996, %v998
    %v1000 = vsel %vm988, %v978, %v981
    %v1001 = vsel %vm991, %v987, 1326507024
    %v1002 = vsel %vm990, %v984, %v1001
    %v1003 = vsel %vm989, %v1000, %v1002
    %v1004 = vshll.u32 %v964, 8
    %v1005 = vmul.u32.u64.compose %v1004, %v1003
    %v1006 = vextract.low.u32 %v1005
    %v1007 = vextract.high.u32 %v1005
    %v1008 = vmul.u32.u64.compose %v1004, %v999
    %v1009 = vextract.low.u32 %v1008
    %v1010 = vextract.high.u32 %v1008
    %v1011 = vmul.u32 %v1004, %v995
    %v1012 = vadd.s32 %v1007, %v1009
    %vm1013 = vc.u32 %v1007, %v1009
    %v1014 = vadd.s32 %v1010, 1
    %v1015 = vsel %vm1013, %v1014, %v1010
    %v1016 = vadd.s32 %v1011, %v1015
    %v1017 = vadd.s32 %v1016, 536870912
    %v1018 = vshrl.u32 %v1017, 30
    %v1019 = vshll.u32 %v1018, 30
    %v1020 = vsub.s32 %v1016, %v1019
    %vm1021 = vcmp.lt.s32.totalorder %v1020, 0
    %v1022 = vsub.s32 0, %v1020
    %v1023 = vsel %vm1021, %v1022, %v1020
    %v1024 = vclz %v1023
    %v1025 = vsub.s32 %v1024, 2
    %vm1026 = vcmp.gt.s32.totalorder 0, %v1025
    %v1027 = vsel %vm1026, 0, %v1025
    %v1028 = vsub.s32 32, %v1027
    %v1029 = vshll.u32 %v1020, %v1027
    %v1030 = vshrl.u32 %v1012, %v1028
    %v1031 = vor.u32 %v1029, %v1030
    %v1032 = vsub.s32 4294967266, %v1027
    %v1033 = vadd.s32 %v1032, 127
    %v1034 = vshll.u32 %v1033, 23
    %v1035 = vor.u32 4788187, %v1034
    %v1036 = vand.u32 2147483647, %v1035
    %v1038 = vcvt.s32.f32 %v1031
    %v1039 = vmul.f32 %v1038, %v1036
    %v1040 = vxor.u32 %v1039, 2147483648
    %v1041 = vsel %vm958, %v1040, %v1039
    %v1042 = vsub.s32 4, %v1018
    %v1043 = vsel %vm958, %v1042, %v1018
    %v1044 = vsel %vm957, %v813, %v1041
    %v1045 = vsel %vm957, 0, %v1043
    %v1046 = vcosq.f32.pop %v1044
    %v1047 = vsinq.f32.pop %v1044
    %vm1048 = vweird.f32 %v813
    %v1049 = vadd.s32 %v1045, 3
    %v1050 = vand.u32 %v1049, 3
    %vm1051 = vcmp.lt.s32.totalorder %v1050, 2
    %vm1052 = vcmp.eq.s32.totalorder %v1050, 0
    %v1053 = vxor.u32 %v1047, 2147483648
    %v1054 = vsel %vm1052, %v1046, %v1053
    %vm1055 = vcmp.eq.s32.totalorder %v1050, 2
    %v1056 = vxor.u32 %v1046, 2147483648
    %v1057 = vsel %vm1055, %v1056, %v1047
    %v1058 = vsel %vm1051, %v1054, %v1057
    %v1059 = vsel %vm1048, nan, %v1058
    %v1060 = vand.u32 2147483647, %v819
    %vm1061 = vcmp.le.f32.partialorder %v1060, 0.7853982
    %vm1062 = vcmp.lt.s32.totalorder %v819, 0
    %v1063 = vand.u32 %v819, 2139095040
    %v1064 = vshrl.u32 %v1063, 23
    %v1065 = vsub.s32 %v1064, 127
    %v1066 = vand.u32 2147483647, %v819
    %v1067 = vand.u32 %v1066, 8388607
    %v1068 = vor.u32 %v1067, 8388608
    %v1069 = vsub.s32 0, %v1068
    %v1070 = vadd.s32 %v1065, 1
    %vm1071 = vcmp.gt.s32.totalorder %v1070, 0
    %v1072 = vsel %vm1071, %v1070, 0
    %v1073 = vshrl.u32 %v1072, 5
    %v1074 = vand.u32 %v1072, 31
    %v1075 = vsub.s32 32, %v1074
    %v1076 = vshrl.u32 683565275, %v1075
    %v1077 = vshll.u32 683565275, %v1074
    %v1078 = vshrl.u32 2475754826, %v1075
    %v1079 = vor.u32 %v1077, %v1078
    %v1080 = vshll.u32 2475754826, %v1074
    %v1081 = vshrl.u32 2131351028, %v1075
    %v1082 = vor.u32 %v1080, %v1081
    %v1083 = vshll.u32 2131351028, %v1074
    %v1084 = vshrl.u32 2102212464, %v1075
    %v1085 = vor.u32 %v1083, %v1084
    %v1086 = vshll.u32 2102212464, %v1074
    %v1087 = vshrl.u32 920167782, %v1075
    %v1088 = vor.u32 %v1086, %v1087
    %v1089 = vshll.u32 920167782, %v1074
    %v1090 = vshrl.u32 1326507024, %v1075
    %v1091 = vor.u32 %v1089, %v1090
    %vm1092 = vcmp.lt.s32.totalorder %v1073, 1
    %vm1093 = vcmp.lt.s32.totalorder %v1073, 2
    %vm1094 = vcmp.lt.s32.totalorder %v1073, 3
    %vm1095 = vcmp.lt.s32.totalorder %v1073, 4
    %v1096 = vsel %vm1092, %v1076, %v1079
    %v1097 = vsel %vm1095, %v1085, 2102212464
    %v1098 = vsel %vm1094, %v1082, %v1097
    %v1099 = vsel %vm1093, %v1096, %v1098
    %v1100 = vsel %vm1092, %v1079, %v1082
    %v1101 = vsel %vm1095, %v1088, 920167782
    %v1102 = vsel %vm1094, %v1085, %v1101
    %v1103 = vsel %vm1093, %v1100, %v1102
    %v1104 = vsel %vm1092, %v1082, %v1085
    %v1105 = vsel %vm1095, %v1091, 1326507024
    %v1106 = vsel %vm1094, %v1088, %v1105
    %v1107 = vsel %vm1093, %v1104, %v1106
    %v1108 = vshll.u32 %v1068, 8
    %v1109 = vmul.u32.u64.compose %v1108, %v1107
    %v1110 = vextract.low.u32 %v1109
    %v1111 = vextract.high.u32 %v1109
    %v1112 = vmul.u32.u64.compose %v1108, %v1103
    %v1113 = vextract.low.u32 %v1112
    %v1114 = vextract.high.u32 %v1112
    %v1115 = vmul.u32 %v1108, %v1099
    %v1116 = vadd.s32 %v1111, %v1113
    %vm1117 = vc.u32 %v1111, %v1113
    %v1118 = vadd.s32 %v1114, 1
    %v1119 = vsel %vm1117, %v1118, %v1114
    %v1120 = vadd.s32 %v1115, %v1119
    %v1121 = vadd.s32 %v1120, 536870912
    %v1122 = vshrl.u32 %v1121, 30
    %v1123 = vshll.u32 %v1122, 30
    %v1124 = vsub.s32 %v1120, %v1123
    %vm1125 = vcmp.lt.s32.totalorder %v1124, 0
    %v1126 = vsub.s32 0, %v1124
    %v1127 = vsel %vm1125, %v1126, %v1124
    %v1128 = vclz %v1127
    %v1129 = vsub.s32 %v1128, 2
    %vm1130 = vcmp.gt.s32.totalorder 0, %v1129
    %v1131 = vsel %vm1130, 0, %v1129
    %v1132 = vsub.s32 32, %v1131
    %v1133 = vshll.u32 %v1124, %v1131
    %v1134 = vshrl.u32 %v1116, %v1132
    %v1135 = vor.u32 %v1133, %v1134
    %v1136 = vsub.s32 4294967266, %v1131
    %v1137 = vadd.s32 %v1136, 127
    %v1138 = vshll.u32 %v1137, 23
    %v1139 = vor.u32 4788187, %v1138
    %v1140 = vand.u32 2147483647, %v1139
    %v1142 = vcvt.s32.f32 %v1135
    %v1143 = vmul.f32 %v1142, %v1140
    %v1144 = vxor.u32 %v1143, 2147483648
    %v1145 = vsel %vm1062, %v1144, %v1143
    %v1146 = vsub.s32 4, %v1122
    %v1147 = vsel %vm1062, %v1146, %v1122
    %v1148 = vsel %vm1061, %v819, %v1145
    %v1149 = vsel %vm1061, 0, %v1147
    %v1150 = vcosq.f32.pop %v1148
    %v1151 = vsinq.f32.pop %v1148
    %vm1152 = vweird.f32 %v819
    %v1153 = vadd.s32 %v1149, 3
    %v1154 = vand.u32 %v1153, 3
    %vm1155 = vcmp.lt.s32.totalorder %v1154, 2
    %vm1156 = vcmp.eq.s32.totalorder %v1154, 0
    %v1157 = vxor.u32 %v1151, 2147483648
    %v1158 = vsel %vm1156, %v1150, %v1157
    %vm1159 = vcmp.eq.s32.totalorder %v1154, 2
    %v1160 = vxor.u32 %v1150, 2147483648
    %v1161 = vsel %vm1159, %v1160, %v1151
    %v1162 = vsel %vm1155, %v1158, %v1161
    %v1163 = vsel %vm1152, nan, %v1162
    %v1164 = vand.u32 2147483647, %v825
    %vm1165 = vcmp.le.f32.partialorder %v1164, 0.7853982
    %vm1166 = vcmp.lt.s32.totalorder %v825, 0
    %v1167 = vand.u32 %v825, 2139095040
    %v1168 = vshrl.u32 %v1167, 23
    %v1169 = vsub.s32 %v1168, 127
    %v1170 = vand.u32 2147483647, %v825
    %v1171 = vand.u32 %v1170, 8388607
    %v1172 = vor.u32 %v1171, 8388608
    %v1173 = vsub.s32 0, %v1172
    %v1174 = vadd.s32 %v1169, 1
    %vm1175 = vcmp.gt.s32.totalorder %v1174, 0
    %v1176 = vsel %vm1175, %v1174, 0
    %v1177 = vshrl.u32 %v1176, 5
    %v1178 = vand.u32 %v1176, 31
    %v1179 = vsub.s32 32, %v1178
    %v1180 = vshrl.u32 683565275, %v1179
    %v1181 = vshll.u32 683565275, %v1178
    %v1182 = vshrl.u32 2475754826, %v1179
    %v1183 = vor.u32 %v1181, %v1182
    %v1184 = vshll.u32 2475754826, %v1178
    %v1185 = vshrl.u32 2131351028, %v1179
    %v1186 = vor.u32 %v1184, %v1185
    %v1187 = vshll.u32 2131351028, %v1178
    %v1188 = vshrl.u32 2102212464, %v1179
    %v1189 = vor.u32 %v1187, %v1188
    %v1190 = vshll.u32 2102212464, %v1178
    %v1191 = vshrl.u32 920167782, %v1179
    %v1192 = vor.u32 %v1190, %v1191
    %v1193 = vshll.u32 920167782, %v1178
    %v1194 = vshrl.u32 1326507024, %v1179
    %v1195 = vor.u32 %v1193, %v1194
    %vm1196 = vcmp.lt.s32.totalorder %v1177, 1
    %vm1197 = vcmp.lt.s32.totalorder %v1177, 2
    %vm1198 = vcmp.lt.s32.totalorder %v1177, 3
    %vm1199 = vcmp.lt.s32.totalorder %v1177, 4
    %v1200 = vsel %vm1196, %v1180, %v1183
    %v1201 = vsel %vm1199, %v1189, 2102212464
    %v1202 = vsel %vm1198, %v1186, %v1201
    %v1203 = vsel %vm1197, %v1200, %v1202
    %v1204 = vsel %vm1196, %v1183, %v1186
    %v1205 = vsel %vm1199, %v1192, 920167782
    %v1206 = vsel %vm1198, %v1189, %v1205
    %v1207 = vsel %vm1197, %v1204, %v1206
    %v1208 = vsel %vm1196, %v1186, %v1189
    %v1209 = vsel %vm1199, %v1195, 1326507024
    %v1210 = vsel %vm1198, %v1192, %v1209
    %v1211 = vsel %vm1197, %v1208, %v1210
    %v1212 = vshll.u32 %v1172, 8
    %v1213 = vmul.u32.u64.compose %v1212, %v1211
    %v1214 = vextract.low.u32 %v1213
    %v1215 = vextract.high.u32 %v1213
    %v1216 = vmul.u32.u64.compose %v1212, %v1207
    %v1217 = vextract.low.u32 %v1216
    %v1218 = vextract.high.u32 %v1216
    %v1219 = vmul.u32 %v1212, %v1203
    %v1220 = vadd.s32 %v1215, %v1217
    %vm1221 = vc.u32 %v1215, %v1217
    %v1222 = vadd.s32 %v1218, 1
    %v1223 = vsel %vm1221, %v1222, %v1218
    %v1224 = vadd.s32 %v1219, %v1223
    %v1225 = vadd.s32 %v1224, 536870912
    %v1226 = vshrl.u32 %v1225, 30
    %v1227 = vshll.u32 %v1226, 30
    %v1228 = vsub.s32 %v1224, %v1227
    %vm1229 = vcmp.lt.s32.totalorder %v1228, 0
    %v1230 = vsub.s32 0, %v1228
    %v1231 = vsel %vm1229, %v1230, %v1228
    %v1232 = vclz %v1231
    %v1233 = vsub.s32 %v1232, 2
    %vm1234 = vcmp.gt.s32.totalorder 0, %v1233
    %v1235 = vsel %vm1234, 0, %v1233
    %v1236 = vsub.s32 32, %v1235
    %v1237 = vshll.u32 %v1228, %v1235
    %v1238 = vshrl.u32 %v1220, %v1236
    %v1239 = vor.u32 %v1237, %v1238
    %v1240 = vsub.s32 4294967266, %v1235
    %v1241 = vadd.s32 %v1240, 127
    %v1242 = vshll.u32 %v1241, 23
    %v1243 = vor.u32 4788187, %v1242
    %v1244 = vand.u32 2147483647, %v1243
    %v1246 = vcvt.s32.f32 %v1239
    %v1247 = vmul.f32 %v1246, %v1244
    %v1248 = vxor.u32 %v1247, 2147483648
    %v1249 = vsel %vm1166, %v1248, %v1247
    %v1250 = vsub.s32 4, %v1226
    %v1251 = vsel %vm1166, %v1250, %v1226
    %v1252 = vsel %vm1165, %v825, %v1249
    %v1253 = vsel %vm1165, 0, %v1251
    %v1254 = vcosq.f32.pop %v1252
    %v1255 = vsinq.f32.pop %v1252
    %vm1256 = vweird.f32 %v825
    %v1257 = vadd.s32 %v1253, 3
    %v1258 = vand.u32 %v1257, 3
    %vm1259 = vcmp.lt.s32.totalorder %v1258, 2
    %vm1260 = vcmp.eq.s32.totalorder %v1258, 0
    %v1261 = vxor.u32 %v1255, 2147483648
    %v1262 = vsel %vm1260, %v1254, %v1261
    %vm1263 = vcmp.eq.s32.totalorder %v1258, 2
    %v1264 = vxor.u32 %v1254, 2147483648
    %v1265 = vsel %vm1263, %v1264, %v1255
    %v1266 = vsel %vm1259, %v1262, %v1265
    %v1267 = vsel %vm1256, nan, %v1266
    %v1268 = vand.u32 2147483647, %v831
    %vm1269 = vcmp.le.f32.partialorder %v1268, 0.7853982
    %vm1270 = vcmp.lt.s32.totalorder %v831, 0
    %v1271 = vand.u32 %v831, 2139095040
    %v1272 = vshrl.u32 %v1271, 23
    %v1273 = vsub.s32 %v1272, 127
    %v1274 = vand.u32 2147483647, %v831
    %v1275 = vand.u32 %v1274, 8388607
    %v1276 = vor.u32 %v1275, 8388608
    %v1277 = vsub.s32 0, %v1276
    %v1278 = vadd.s32 %v1273, 1
    %vm1279 = vcmp.gt.s32.totalorder %v1278, 0
    %v1280 = vsel %vm1279, %v1278, 0
    %v1281 = vshrl.u32 %v1280, 5
    %v1282 = vand.u32 %v1280, 31
    %v1283 = vsub.s32 32, %v1282
    %v1284 = vshrl.u32 683565275, %v1283
    %v1285 = vshll.u32 683565275, %v1282
    %v1286 = vshrl.u32 2475754826, %v1283
    %v1287 = vor.u32 %v1285, %v1286
    %v1288 = vshll.u32 2475754826, %v1282
    %v1289 = vshrl.u32 2131351028, %v1283
    %v1290 = vor.u32 %v1288, %v1289
    %v1291 = vshll.u32 2131351028, %v1282
    %v1292 = vshrl.u32 2102212464, %v1283
    %v1293 = vor.u32 %v1291, %v1292
    %v1294 = vshll.u32 2102212464, %v1282
    %v1295 = vshrl.u32 920167782, %v1283
    %v1296 = vor.u32 %v1294, %v1295
    %v1297 = vshll.u32 920167782, %v1282
    %v1298 = vshrl.u32 1326507024, %v1283
    %v1299 = vor.u32 %v1297, %v1298
    %vm1300 = vcmp.lt.s32.totalorder %v1281, 1
    %vm1301 = vcmp.lt.s32.totalorder %v1281, 2
    %vm1302 = vcmp.lt.s32.totalorder %v1281, 3
    %vm1303 = vcmp.lt.s32.totalorder %v1281, 4
    %v1304 = vsel %vm1300, %v1284, %v1287
    %v1305 = vsel %vm1303, %v1293, 2102212464
    %v1306 = vsel %vm1302, %v1290, %v1305
    %v1307 = vsel %vm1301, %v1304, %v1306
    %v1308 = vsel %vm1300, %v1287, %v1290
    %v1309 = vsel %vm1303, %v1296, 920167782
    %v1310 = vsel %vm1302, %v1293, %v1309
    %v1311 = vsel %vm1301, %v1308, %v1310
    %v1312 = vsel %vm1300, %v1290, %v1293
    %v1313 = vsel %vm1303, %v1299, 1326507024
    %v1314 = vsel %vm1302, %v1296, %v1313
    %v1315 = vsel %vm1301, %v1312, %v1314
    %v1316 = vshll.u32 %v1276, 8
    %v1317 = vmul.u32.u64.compose %v1316, %v1315
    %v1318 = vextract.low.u32 %v1317
    %v1319 = vextract.high.u32 %v1317
    %v1320 = vmul.u32.u64.compose %v1316, %v1311
    %v1321 = vextract.low.u32 %v1320
    %v1322 = vextract.high.u32 %v1320
    %v1323 = vmul.u32 %v1316, %v1307
    %v1324 = vadd.s32 %v1319, %v1321
    %vm1325 = vc.u32 %v1319, %v1321
    %v1326 = vadd.s32 %v1322, 1
    %v1327 = vsel %vm1325, %v1326, %v1322
    %v1328 = vadd.s32 %v1323, %v1327
    %v1329 = vadd.s32 %v1328, 536870912
    %v1330 = vshrl.u32 %v1329, 30
    %v1331 = vshll.u32 %v1330, 30
    %v1332 = vsub.s32 %v1328, %v1331
    %vm1333 = vcmp.lt.s32.totalorder %v1332, 0
    %v1334 = vsub.s32 0, %v1332
    %v1335 = vsel %vm1333, %v1334, %v1332
    %v1336 = vclz %v1335
    %v1337 = vsub.s32 %v1336, 2
    %vm1338 = vcmp.gt.s32.totalorder 0, %v1337
    %v1339 = vsel %vm1338, 0, %v1337
    %v1340 = vsub.s32 32, %v1339
    %v1341 = vshll.u32 %v1332, %v1339
    %v1342 = vshrl.u32 %v1324, %v1340
    %v1343 = vor.u32 %v1341, %v1342
    %v1344 = vsub.s32 4294967266, %v1339
    %v1345 = vadd.s32 %v1344, 127
    %v1346 = vshll.u32 %v1345, 23
    %v1347 = vor.u32 4788187, %v1346
    %v1348 = vand.u32 2147483647, %v1347
    %v1350 = vcvt.s32.f32 %v1343
    %v1351 = vmul.f32 %v1350, %v1348
    %v1352 = vxor.u32 %v1351, 2147483648
    %v1353 = vsel %vm1270, %v1352, %v1351
    %v1354 = vsub.s32 4, %v1330
    %v1355 = vsel %vm1270, %v1354, %v1330
    %v1356 = vsel %vm1269, %v831, %v1353
    %v1357 = vsel %vm1269, 0, %v1355
    %v1358 = vcosq.f32.pop %v1356
    %v1359 = vsinq.f32.pop %v1356
    %vm1360 = vweird.f32 %v831
    %v1361 = vadd.s32 %v1357, 3
    %v1362 = vand.u32 %v1361, 3
    %vm1363 = vcmp.lt.s32.totalorder %v1362, 2
    %vm1364 = vcmp.eq.s32.totalorder %v1362, 0
    %v1365 = vxor.u32 %v1359, 2147483648
    %v1366 = vsel %vm1364, %v1358, %v1365
    %vm1367 = vcmp.eq.s32.totalorder %v1362, 2
    %v1368 = vxor.u32 %v1358, 2147483648
    %v1369 = vsel %vm1367, %v1368, %v1359
    %v1370 = vsel %vm1363, %v1366, %v1369
    %v1371 = vsel %vm1360, nan, %v1370
    %v1372 = vand.u32 2147483647, %v837
    %vm1373 = vcmp.le.f32.partialorder %v1372, 0.7853982
    %vm1374 = vcmp.lt.s32.totalorder %v837, 0
    %v1375 = vand.u32 %v837, 2139095040
    %v1376 = vshrl.u32 %v1375, 23
    %v1377 = vsub.s32 %v1376, 127
    %v1378 = vand.u32 2147483647, %v837
    %v1379 = vand.u32 %v1378, 8388607
    %v1380 = vor.u32 %v1379, 8388608
    %v1381 = vsub.s32 0, %v1380
    %v1382 = vadd.s32 %v1377, 1
    %vm1383 = vcmp.gt.s32.totalorder %v1382, 0
    %v1384 = vsel %vm1383, %v1382, 0
    %v1385 = vshrl.u32 %v1384, 5
    %v1386 = vand.u32 %v1384, 31
    %v1387 = vsub.s32 32, %v1386
    %v1388 = vshrl.u32 683565275, %v1387
    %v1389 = vshll.u32 683565275, %v1386
    %v1390 = vshrl.u32 2475754826, %v1387
    %v1391 = vor.u32 %v1389, %v1390
    %v1392 = vshll.u32 2475754826, %v1386
    %v1393 = vshrl.u32 2131351028, %v1387
    %v1394 = vor.u32 %v1392, %v1393
    %v1395 = vshll.u32 2131351028, %v1386
    %v1396 = vshrl.u32 2102212464, %v1387
    %v1397 = vor.u32 %v1395, %v1396
    %v1398 = vshll.u32 2102212464, %v1386
    %v1399 = vshrl.u32 920167782, %v1387
    %v1400 = vor.u32 %v1398, %v1399
    %v1401 = vshll.u32 920167782, %v1386
    %v1402 = vshrl.u32 1326507024, %v1387
    %v1403 = vor.u32 %v1401, %v1402
    %vm1404 = vcmp.lt.s32.totalorder %v1385, 1
    %vm1405 = vcmp.lt.s32.totalorder %v1385, 2
    %vm1406 = vcmp.lt.s32.totalorder %v1385, 3
    %vm1407 = vcmp.lt.s32.totalorder %v1385, 4
    %v1408 = vsel %vm1404, %v1388, %v1391
    %v1409 = vsel %vm1407, %v1397, 2102212464
    %v1410 = vsel %vm1406, %v1394, %v1409
    %v1411 = vsel %vm1405, %v1408, %v1410
    %v1412 = vsel %vm1404, %v1391, %v1394
    %v1413 = vsel %vm1407, %v1400, 920167782
    %v1414 = vsel %vm1406, %v1397, %v1413
    %v1415 = vsel %vm1405, %v1412, %v1414
    %v1416 = vsel %vm1404, %v1394, %v1397
    %v1417 = vsel %vm1407, %v1403, 1326507024
    %v1418 = vsel %vm1406, %v1400, %v1417
    %v1419 = vsel %vm1405, %v1416, %v1418
    %v1420 = vshll.u32 %v1380, 8
    %v1421 = vmul.u32.u64.compose %v1420, %v1419
    %v1422 = vextract.low.u32 %v1421
    %v1423 = vextract.high.u32 %v1421
    %v1424 = vmul.u32.u64.compose %v1420, %v1415
    %v1425 = vextract.low.u32 %v1424
    %v1426 = vextract.high.u32 %v1424
    %v1427 = vmul.u32 %v1420, %v1411
    %v1428 = vadd.s32 %v1423, %v1425
    %vm1429 = vc.u32 %v1423, %v1425
    %v1430 = vadd.s32 %v1426, 1
    %v1431 = vsel %vm1429, %v1430, %v1426
    %v1432 = vadd.s32 %v1427, %v1431
    %v1433 = vadd.s32 %v1432, 536870912
    %v1434 = vshrl.u32 %v1433, 30
    %v1435 = vshll.u32 %v1434, 30
    %v1436 = vsub.s32 %v1432, %v1435
    %vm1437 = vcmp.lt.s32.totalorder %v1436, 0
    %v1438 = vsub.s32 0, %v1436
    %v1439 = vsel %vm1437, %v1438, %v1436
    %v1440 = vclz %v1439
    %v1441 = vsub.s32 %v1440, 2
    %vm1442 = vcmp.gt.s32.totalorder 0, %v1441
    %v1443 = vsel %vm1442, 0, %v1441
    %v1444 = vsub.s32 32, %v1443
    %v1445 = vshll.u32 %v1436, %v1443
    %v1446 = vshrl.u32 %v1428, %v1444
    %v1447 = vor.u32 %v1445, %v1446
    %v1448 = vsub.s32 4294967266, %v1443
    %v1449 = vadd.s32 %v1448, 127
    %v1450 = vshll.u32 %v1449, 23
    %v1451 = vor.u32 4788187, %v1450
    %v1452 = vand.u32 2147483647, %v1451
    %v1454 = vcvt.s32.f32 %v1447
    %v1455 = vmul.f32 %v1454, %v1452
    %v1456 = vxor.u32 %v1455, 2147483648
    %v1457 = vsel %vm1374, %v1456, %v1455
    %v1458 = vsub.s32 4, %v1434
    %v1459 = vsel %vm1374, %v1458, %v1434
    %v1460 = vsel %vm1373, %v837, %v1457
    %v1461 = vsel %vm1373, 0, %v1459
    %v1462 = vcosq.f32.pop %v1460
    %v1463 = vsinq.f32.pop %v1460
    %vm1464 = vweird.f32 %v837
    %v1465 = vadd.s32 %v1461, 3
    %v1466 = vand.u32 %v1465, 3
    %vm1467 = vcmp.lt.s32.totalorder %v1466, 2
    %vm1468 = vcmp.eq.s32.totalorder %v1466, 0
    %v1469 = vxor.u32 %v1463, 2147483648
    %v1470 = vsel %vm1468, %v1462, %v1469
    %vm1471 = vcmp.eq.s32.totalorder %v1466, 2
    %v1472 = vxor.u32 %v1462, 2147483648
    %v1473 = vsel %vm1471, %v1472, %v1463
    %v1474 = vsel %vm1467, %v1470, %v1473
    %v1475 = vsel %vm1464, nan, %v1474
    %v1476 = vand.u32 2147483647, %v843
    %vm1477 = vcmp.le.f32.partialorder %v1476, 0.7853982
    %vm1478 = vcmp.lt.s32.totalorder %v843, 0
    %v1479 = vand.u32 %v843, 2139095040
    %v1480 = vshrl.u32 %v1479, 23
    %v1481 = vsub.s32 %v1480, 127
    %v1482 = vand.u32 2147483647, %v843
    %v1483 = vand.u32 %v1482, 8388607
    %v1484 = vor.u32 %v1483, 8388608
    %v1485 = vsub.s32 0, %v1484
    %v1486 = vadd.s32 %v1481, 1
    %vm1487 = vcmp.gt.s32.totalorder %v1486, 0
    %v1488 = vsel %vm1487, %v1486, 0
    %v1489 = vshrl.u32 %v1488, 5
    %v1490 = vand.u32 %v1488, 31
    %v1491 = vsub.s32 32, %v1490
    %v1492 = vshrl.u32 683565275, %v1491
    %v1493 = vshll.u32 683565275, %v1490
    %v1494 = vshrl.u32 2475754826, %v1491
    %v1495 = vor.u32 %v1493, %v1494
    %v1496 = vshll.u32 2475754826, %v1490
    %v1497 = vshrl.u32 2131351028, %v1491
    %v1498 = vor.u32 %v1496, %v1497
    %v1499 = vshll.u32 2131351028, %v1490
    %v1500 = vshrl.u32 2102212464, %v1491
    %v1501 = vor.u32 %v1499, %v1500
    %v1502 = vshll.u32 2102212464, %v1490
    %v1503 = vshrl.u32 920167782, %v1491
    %v1504 = vor.u32 %v1502, %v1503
    %v1505 = vshll.u32 920167782, %v1490
    %v1506 = vshrl.u32 1326507024, %v1491
    %v1507 = vor.u32 %v1505, %v1506
    %vm1508 = vcmp.lt.s32.totalorder %v1489, 1
    %vm1509 = vcmp.lt.s32.totalorder %v1489, 2
    %vm1510 = vcmp.lt.s32.totalorder %v1489, 3
    %vm1511 = vcmp.lt.s32.totalorder %v1489, 4
    %v1512 = vsel %vm1508, %v1492, %v1495
    %v1513 = vsel %vm1511, %v1501, 2102212464
    %v1514 = vsel %vm1510, %v1498, %v1513
    %v1515 = vsel %vm1509, %v1512, %v1514
    %v1516 = vsel %vm1508, %v1495, %v1498
    %v1517 = vsel %vm1511, %v1504, 920167782
    %v1518 = vsel %vm1510, %v1501, %v1517
    %v1519 = vsel %vm1509, %v1516, %v1518
    %v1520 = vsel %vm1508, %v1498, %v1501
    %v1521 = vsel %vm1511, %v1507, 1326507024
    %v1522 = vsel %vm1510, %v1504, %v1521
    %v1523 = vsel %vm1509, %v1520, %v1522
    %v1524 = vshll.u32 %v1484, 8
    %v1525 = vmul.u32.u64.compose %v1524, %v1523
    %v1526 = vextract.low.u32 %v1525
    %v1527 = vextract.high.u32 %v1525
    %v1528 = vmul.u32.u64.compose %v1524, %v1519
    %v1529 = vextract.low.u32 %v1528
    %v1530 = vextract.high.u32 %v1528
    %v1531 = vmul.u32 %v1524, %v1515
    %v1532 = vadd.s32 %v1527, %v1529
    %vm1533 = vc.u32 %v1527, %v1529
    %v1534 = vadd.s32 %v1530, 1
    %v1535 = vsel %vm1533, %v1534, %v1530
    %v1536 = vadd.s32 %v1531, %v1535
    %v1537 = vadd.s32 %v1536, 536870912
    %v1538 = vshrl.u32 %v1537, 30
    %v1539 = vshll.u32 %v1538, 30
    %v1540 = vsub.s32 %v1536, %v1539
    %vm1541 = vcmp.lt.s32.totalorder %v1540, 0
    %v1542 = vsub.s32 0, %v1540
    %v1543 = vsel %vm1541, %v1542, %v1540
    %v1544 = vclz %v1543
    %v1545 = vsub.s32 %v1544, 2
    %vm1546 = vcmp.gt.s32.totalorder 0, %v1545
    %v1547 = vsel %vm1546, 0, %v1545
    %v1548 = vsub.s32 32, %v1547
    %v1549 = vshll.u32 %v1540, %v1547
    %v1550 = vshrl.u32 %v1532, %v1548
    %v1551 = vor.u32 %v1549, %v1550
    %v1552 = vsub.s32 4294967266, %v1547
    %v1553 = vadd.s32 %v1552, 127
    %v1554 = vshll.u32 %v1553, 23
    %v1555 = vor.u32 4788187, %v1554
    %v1556 = vand.u32 2147483647, %v1555
    %v1558 = vcvt.s32.f32 %v1551
    %v1559 = vmul.f32 %v1558, %v1556
    %v1560 = vxor.u32 %v1559, 2147483648
    %v1561 = vsel %vm1478, %v1560, %v1559
    %v1562 = vsub.s32 4, %v1538
    %v1563 = vsel %vm1478, %v1562, %v1538
    %v1564 = vsel %vm1477, %v843, %v1561
    %v1565 = vsel %vm1477, 0, %v1563
    %v1566 = vcosq.f32.pop %v1564
    %v1567 = vsinq.f32.pop %v1564
    %vm1568 = vweird.f32 %v843
    %v1569 = vadd.s32 %v1565, 3
    %v1570 = vand.u32 %v1569, 3
    %vm1571 = vcmp.lt.s32.totalorder %v1570, 2
    %vm1572 = vcmp.eq.s32.totalorder %v1570, 0
    %v1573 = vxor.u32 %v1567, 2147483648
    %v1574 = vsel %vm1572, %v1566, %v1573
    %vm1575 = vcmp.eq.s32.totalorder %v1570, 2
    %v1576 = vxor.u32 %v1566, 2147483648
    %v1577 = vsel %vm1575, %v1576, %v1567
    %v1578 = vsel %vm1571, %v1574, %v1577
    %v1579 = vsel %vm1568, nan, %v1578
    %v1580 = vand.u32 2147483647, %v849
    %vm1581 = vcmp.le.f32.partialorder %v1580, 0.7853982
    %vm1582 = vcmp.lt.s32.totalorder %v849, 0
    %v1583 = vand.u32 %v849, 2139095040
    %v1584 = vshrl.u32 %v1583, 23
    %v1585 = vsub.s32 %v1584, 127
    %v1586 = vand.u32 2147483647, %v849
    %v1587 = vand.u32 %v1586, 8388607
    %v1588 = vor.u32 %v1587, 8388608
    %v1589 = vsub.s32 0, %v1588
    %v1590 = vadd.s32 %v1585, 1
    %vm1591 = vcmp.gt.s32.totalorder %v1590, 0
    %v1592 = vsel %vm1591, %v1590, 0
    %v1593 = vshrl.u32 %v1592, 5
    %v1594 = vand.u32 %v1592, 31
    %v1595 = vsub.s32 32, %v1594
    %v1596 = vshrl.u32 683565275, %v1595
    %v1597 = vshll.u32 683565275, %v1594
    %v1598 = vshrl.u32 2475754826, %v1595
    %v1599 = vor.u32 %v1597, %v1598
    %v1600 = vshll.u32 2475754826, %v1594
    %v1601 = vshrl.u32 2131351028, %v1595
    %v1602 = vor.u32 %v1600, %v1601
    %v1603 = vshll.u32 2131351028, %v1594
    %v1604 = vshrl.u32 2102212464, %v1595
    %v1605 = vor.u32 %v1603, %v1604
    %v1606 = vshll.u32 2102212464, %v1594
    %v1607 = vshrl.u32 920167782, %v1595
    %v1608 = vor.u32 %v1606, %v1607
    %v1609 = vshll.u32 920167782, %v1594
    %v1610 = vshrl.u32 1326507024, %v1595
    %v1611 = vor.u32 %v1609, %v1610
    %vm1612 = vcmp.lt.s32.totalorder %v1593, 1
    %vm1613 = vcmp.lt.s32.totalorder %v1593, 2
    %vm1614 = vcmp.lt.s32.totalorder %v1593, 3
    %vm1615 = vcmp.lt.s32.totalorder %v1593, 4
    %v1616 = vsel %vm1612, %v1596, %v1599
    %v1617 = vsel %vm1615, %v1605, 2102212464
    %v1618 = vsel %vm1614, %v1602, %v1617
    %v1619 = vsel %vm1613, %v1616, %v1618
    %v1620 = vsel %vm1612, %v1599, %v1602
    %v1621 = vsel %vm1615, %v1608, 920167782
    %v1622 = vsel %vm1614, %v1605, %v1621
    %v1623 = vsel %vm1613, %v1620, %v1622
    %v1624 = vsel %vm1612, %v1602, %v1605
    %v1625 = vsel %vm1615, %v1611, 1326507024
    %v1626 = vsel %vm1614, %v1608, %v1625
    %v1627 = vsel %vm1613, %v1624, %v1626
    %v1628 = vshll.u32 %v1588, 8
    %v1629 = vmul.u32.u64.compose %v1628, %v1627
    %v1630 = vextract.low.u32 %v1629
    %v1631 = vextract.high.u32 %v1629
    %v1632 = vmul.u32.u64.compose %v1628, %v1623
    %v1633 = vextract.low.u32 %v1632
    %v1634 = vextract.high.u32 %v1632
    %v1635 = vmul.u32 %v1628, %v1619
    %v1636 = vadd.s32 %v1631, %v1633
    %vm1637 = vc.u32 %v1631, %v1633
    %v1638 = vadd.s32 %v1634, 1
    %v1639 = vsel %vm1637, %v1638, %v1634
    %v1640 = vadd.s32 %v1635, %v1639
    %v1641 = vadd.s32 %v1640, 536870912
    %v1642 = vshrl.u32 %v1641, 30
    %v1643 = vshll.u32 %v1642, 30
    %v1644 = vsub.s32 %v1640, %v1643
    %vm1645 = vcmp.lt.s32.totalorder %v1644, 0
    %v1646 = vsub.s32 0, %v1644
    %v1647 = vsel %vm1645, %v1646, %v1644
    %v1648 = vclz %v1647
    %v1649 = vsub.s32 %v1648, 2
    %vm1650 = vcmp.gt.s32.totalorder 0, %v1649
    %v1651 = vsel %vm1650, 0, %v1649
    %v1652 = vsub.s32 32, %v1651
    %v1653 = vshll.u32 %v1644, %v1651
    %v1654 = vshrl.u32 %v1636, %v1652
    %v1655 = vor.u32 %v1653, %v1654
    %v1656 = vsub.s32 4294967266, %v1651
    %v1657 = vadd.s32 %v1656, 127
    %v1658 = vshll.u32 %v1657, 23
    %v1659 = vor.u32 4788187, %v1658
    %v1660 = vand.u32 2147483647, %v1659
    %v1662 = vcvt.s32.f32 %v1655
    %v1663 = vmul.f32 %v1662, %v1660
    %v1664 = vxor.u32 %v1663, 2147483648
    %v1665 = vsel %vm1582, %v1664, %v1663
    %v1666 = vsub.s32 4, %v1642
    %v1667 = vsel %vm1582, %v1666, %v1642
    %v1668 = vsel %vm1581, %v849, %v1665
    %v1669 = vsel %vm1581, 0, %v1667
    %v1670 = vcosq.f32.pop %v1668
    %v1671 = vsinq.f32.pop %v1668
    %vm1672 = vweird.f32 %v849
    %v1673 = vadd.s32 %v1669, 3
    %v1674 = vand.u32 %v1673, 3
    %vm1675 = vcmp.lt.s32.totalorder %v1674, 2
    %vm1676 = vcmp.eq.s32.totalorder %v1674, 0
    %v1677 = vxor.u32 %v1671, 2147483648
    %v1678 = vsel %vm1676, %v1670, %v1677
    %vm1679 = vcmp.eq.s32.totalorder %v1674, 2
    %v1680 = vxor.u32 %v1670, 2147483648
    %v1681 = vsel %vm1679, %v1680, %v1671
    %v1682 = vsel %vm1675, %v1678, %v1681
    %v1683 = vsel %vm1672, nan, %v1682
    %1684 = vst [vmem:[#allocation7] sm:$0xff] %v955
    %1685 = vst [vmem:[#allocation7 + $0x8] sm:$0xff] %v1059
    %1686 = vst [vmem:[#allocation7 + $0x10] sm:$0xff] %v1163
    %1687 = vst [vmem:[#allocation7 + $0x18] sm:$0xff] %v1267
    %1688 = vst [vmem:[#allocation7 + $0x20] sm:$0xff] %v1371
    %1689 = vst [vmem:[#allocation7 + $0x28] sm:$0xff] %v1475
    %1690 = vst [vmem:[#allocation7 + $0x30] sm:$0xff] %v1579
    %1691 = vst [vmem:[#allocation7 + $0x38] sm:$0xff] %v1683
    // Predicated region
    $region22: #{tpu_custom_call.1} parent=1 // pred_check
      _
    $region23: #{tpu_custom_call.1} parent=1 // pred_check_branch
      %1693 = sbr.rel (0) target = $region25
    $region24: #{tpu_custom_call.1} parent=1 // pred_region
      %s1695 = ssub.s32 1024, 1024
      %1696 = vsyncadd [#allocation4], %s1695
      %s1697 = sshll.u32 [#allocation7], 4
      %s1698 = int_to_ptr.vmem [resolvable:$true] %s1697
      %1703 = dma.vmem_to_hbm [thread:$0]  %s1698, 1024, %s3, [#allocation4], 128, 128, 8
    $region25: #{tpu_custom_call.1} parent=1 // pred_fallthru
      _
    // Predicated region
    $region26: #{tpu_custom_call.1} parent=1 // pred_check
      _
    $region27: #{tpu_custom_call.1} parent=1 // pred_check_branch
      %1705 = sbr.rel (0) target = $region29
    $region28: #{tpu_custom_call.1} parent=1 // pred_region
      %1706 = dma.done [#allocation4], 1024
    $region29: #{tpu_custom_call.1} parent=1 // pred_fallthru
      _
    %1707 = vsyncpa [#allocation3], 1
    %1708 = vsyncpa [#allocation6], 1
    %1709 = vsyncpa [#allocation4], 1

</llo_original>
